<compile_context>
chip_gen: v5e
topology: v5e:2x2
jax: 0.10.0
libtpu: 0.0.40
codegen_flags: <defaults>
</compile_context>

<pallas_src>
import functools

import jax
import jax.numpy as jnp
from jax.experimental import pallas as pl
from jax.experimental.pallas import tpu as pltpu


def _round_up(x, m):
    return ((x + m - 1) // m) * m


def _conv_bn_relu_kernel(w_ref, bias_ref, x_ref, o_ref, *, offsets, relu):
    """Tap-accumulated conv matmul + fused bias + ReLU.

    w_ref:    (n_taps, C_out, C_r)   weights (BN scale pre-folded), bf16/f32
    bias_ref: (C_out, 1)             fused BN / conv bias column, f32
    x_ref:    (1, 1, C_r, L_in)      flattened-spatial input tile (+ halo)
    o_ref:    (1, 1, C_out, T)       output tile (lane-dense)
    offsets:  static lane offset of each conv tap inside the input tile
    """
    t_out = o_ref.shape[-1]
    acc = jnp.dot(w_ref[0], x_ref[0, 0, :, pl.ds(offsets[0], t_out)],
                  preferred_element_type=jnp.float32)
    for t in range(1, len(offsets)):
        acc = acc + jnp.dot(w_ref[t], x_ref[0, 0, :, pl.ds(offsets[t], t_out)],
                            preferred_element_type=jnp.float32)
    y = acc + bias_ref[...]                 # per-channel column -> free lane bcast
    if relu:
        y = jnp.maximum(y, 0.0)
    o_ref[0, 0] = y.astype(o_ref.dtype)     # single lane-dense store


def _run_conv_matmul(w_taps, bias_col, x_tiles, *, offsets, t_out, relu,
                     out_dtype, flops):
    B, n_tiles, c_r, l_in = x_tiles.shape
    n_taps, c_out, _ = w_taps.shape

    kernel = functools.partial(_conv_bn_relu_kernel,
                               offsets=tuple(int(o) for o in offsets),
                               relu=relu)

    out_itemsize = jnp.dtype(out_dtype).itemsize
    in_itemsize = jnp.dtype(x_tiles.dtype).itemsize
    w_bytes = int(n_taps * c_out * c_r) * jnp.dtype(w_taps.dtype).itemsize
    step_bytes = (2 * (c_r * l_in * in_itemsize + c_out * t_out * out_itemsize)
                  + w_bytes + c_out * 8)
    vmem_limit = int(min(max(2 * step_bytes, 32 * 1024 * 1024), 48 * 1024 * 1024))
    bytes_accessed = int(B * n_tiles * (c_r * l_in * in_itemsize
                                        + c_out * t_out * out_itemsize) + w_bytes)

    def build(single_buffer_consts):
        const_kw = {}
        if single_buffer_consts:
            # Constant-index blocks don't need double-buffering (VMEM saving,
            # mainly relevant on v7x's 64 MiB VMEM).
            const_kw["pipeline_mode"] = pl.Buffered(1)
        return pl.pallas_call(
            kernel,
            out_shape=jax.ShapeDtypeStruct((B, n_tiles, c_out, t_out), out_dtype),
            grid=(B, n_tiles),
            in_specs=[
                pl.BlockSpec((n_taps, c_out, c_r), lambda b, t: (0, 0, 0), **const_kw),
                pl.BlockSpec((c_out, 1), lambda b, t: (0, 0), **const_kw),
                pl.BlockSpec((1, 1, c_r, l_in), lambda b, t: (b, t, 0, 0)),
            ],
            out_specs=pl.BlockSpec((1, 1, c_out, t_out), lambda b, t: (b, t, 0, 0)),
            compiler_params=pltpu.CompilerParams(
                dimension_semantics=("parallel", "parallel"),
                vmem_limit_bytes=vmem_limit),
            cost_estimate=pl.CostEstimate(flops=int(flops), transcendentals=0,
                                          bytes_accessed=bytes_accessed),
        )

    try:
        return build(True)(w_taps, bias_col, x_tiles)
    except Exception:
        # Fallback if this JAX build rejects pipeline_mode / Buffered(1).
        return build(False)(w_taps, bias_col, x_tiles)


def basic_conv(x, weight, conv_bias=None, *, stride=1, padding=0, dilation=1,
               groups=1, bn_params=None, bn_eps=1e-5, relu=True,
               compute_dtype=jnp.bfloat16, t_hw=None):
    """Pallas forward for BasicConv: Conv2d -> BatchNorm2d -> ReLU.

    x:        (B, C_in, H, W)  NCHW (PyTorch layout)
    weight:   (C_out, C_in, KH, KW)
    bn_params: None or dict(gamma, beta, mean, var), each (C_out,) -- BatchNorm
               applied with the provided (running) statistics (inference mode).
    """
    if groups != 1:
        # TODO(synk): grouped conv needs a block-diagonal contraction; not implemented.
        raise NotImplementedError("groups != 1 is not supported")
    # TODO(synk): training-mode BatchNorm (batch statistics) would need an extra
    # reduction pass over the conv output; running-stats semantics are used here.

    B, C_in, H, W = x.shape
    C_out, c_in_w, KH, KW = weight.shape
    assert c_in_w == C_in, "weight / input channel mismatch"

    H_out = (H + 2 * padding - dilation * (KH - 1) - 1) // stride + 1
    W_out = (W + 2 * padding - dilation * (KW - 1) - 1) // stride + 1

    # ---- fold BN scale into the weights; keep one f32 bias column ------------
    w32 = weight.astype(jnp.float32)
    if bn_params is not None:
        inv_std = 1.0 / jnp.sqrt(bn_params["var"].astype(jnp.float32) + bn_eps)
        scale = bn_params["gamma"].astype(jnp.float32) * inv_std
        bias = (bn_params["beta"].astype(jnp.float32)
                - bn_params["mean"].astype(jnp.float32) * scale)
    else:
        scale = jnp.ones((C_out,), jnp.float32)
        bias = jnp.zeros((C_out,), jnp.float32)
    if conv_bias is not None:
        bias = bias + scale * conv_bias.astype(jnp.float32)
    w_eff = w32 * scale[:, None, None, None]
    bias_col = bias.reshape(C_out, 1)

    cdt = jnp.dtype(compute_dtype)
    sub = 16 if cdt.itemsize < 4 else 8          # sublane packing of contraction dim

    x_pad = jnp.pad(x, ((0, 0), (0, 0), (padding, padding), (padding, padding)))

    if stride == 1:
        # ---- fused path: no host-side im2col (the 9x HBM amplification is gone)
        H_p, W_p = H + 2 * padding, W + 2 * padding
        C_r = _round_up(C_in, sub)
        x_flat = x_pad.reshape(B, C_in, H_p * W_p)
        if C_r != C_in:
            x_flat = jnp.pad(x_flat, ((0, 0), (0, C_r - C_in), (0, 0)))
        offsets = [kh * dilation * W_p + kw * dilation
                   for kh in range(KH) for kw in range(KW)]
        w_taps = jnp.stack([w_eff[:, :, kh, kw]
                            for kh in range(KH) for kw in range(KW)], axis=0)
        if C_r != C_in:
            w_taps = jnp.pad(w_taps, ((0, 0), (0, 0), (0, C_r - C_in)))
        L_total = H_out * W_p           # valid rows x padded width; extra cols dropped
        row_len = W_p
    else:
        # ---- fallback for strided conv: host im2col (K x amplification) -------
        # TODO(synk): fuse strided patch extraction too (phase-decomposed input).
        cols = []
        for kh in range(KH):
            for kw in range(KW):
                h0, w0 = kh * dilation, kw * dilation
                h1 = h0 + (H_out - 1) * stride + 1
                w1 = w0 + (W_out - 1) * stride + 1
                cols.append(x_pad[:, :, h0:h1:stride, w0:w1:stride])
        K = C_in * KH * KW
        patches = jnp.stack(cols, axis=2).reshape(B, K, H_out * W_out)
        C_r = _round_up(K, sub)
        x_flat = jnp.pad(patches, ((0, 0), (0, C_r - K), (0, 0))) if C_r != K else patches
        w_taps = w_eff.reshape(1, C_out, K)
        if C_r != K:
            w_taps = jnp.pad(w_taps, ((0, 0), (0, 0), (0, C_r - K)))
        offsets = [0]
        L_total = H_out * W_out
        row_len = W_out

    max_off = max(offsets)

    # ---- pick a lane-dense spatial tile against a per-step VMEM budget --------
    if t_hw is not None:
        T = max(128, _round_up(int(t_hw), 128))
    else:
        T = min(2048, _round_up(L_total, 128))
        budget = 20 * 1024 * 1024        # per-step working set; safe on v5e/v6e/v7x
        while T > 128:
            l_in_try = _round_up(T + max_off, 128)
            need = 2 * (C_r * l_in_try * cdt.itemsize + C_out * T * 4)
            if need <= budget:
                break
            T -= 128
    n_tiles = max(1, -(-L_total // T))
    L_in = _round_up(T + max_off, 128)

    # ---- build (slightly overlapping) halo'd input tiles in the compute dtype --
    need_len = (n_tiles - 1) * T + L_in
    if x_flat.shape[-1] < need_len:
        x_flat = jnp.pad(x_flat, ((0, 0), (0, 0), (0, need_len - x_flat.shape[-1])))
    x_flat = x_flat.astype(cdt)
    x_tiles = jnp.stack([x_flat[:, :, j * T: j * T + L_in] for j in range(n_tiles)],
                        axis=1)                               # (B, n_tiles, C_r, L_in)
    w_taps = w_taps.astype(cdt)

    flops = 2 * B * C_out * C_in * KH * KW * H_out * W_out
    out = _run_conv_matmul(w_taps, bias_col, x_tiles, offsets=offsets, t_out=T,
                           relu=relu, out_dtype=x.dtype, flops=flops)

    out = jnp.transpose(out, (0, 2, 1, 3)).reshape(B, C_out, n_tiles * T)
    out = out[:, :, :L_total].reshape(B, C_out, H_out, row_len)[:, :, :, :W_out]
    return out


def basic_conv_ref(x, weight, conv_bias, stride, padding, dilation,
                   bn_params, bn_eps, relu):
    """Pure-JAX reference mirroring the PyTorch forward (BN in eval mode)."""
    y = jax.lax.conv_general_dilated(
        x, weight,
        window_strides=(stride, stride),
        padding=[(padding, padding), (padding, padding)],
        rhs_dilation=(dilation, dilation),
        dimension_numbers=("NCHW", "OIHW", "NCHW"),
        precision=jax.lax.Precision.HIGHEST)
    if conv_bias is not None:
        y = y + conv_bias[None, :, None, None]
    if bn_params is not None:
        g = bn_params["gamma"][None, :, None, None]
        b = bn_params["beta"][None, :, None, None]
        m = bn_params["mean"][None, :, None, None]
        v = bn_params["var"][None, :, None, None]
        y = (y - m) / jnp.sqrt(v + bn_eps) * g + b
    if relu:
        y = jnp.maximum(y, 0.0)
    return y


if __name__ == "__main__":
    key = jax.random.PRNGKey(0)
    k_x, k_w, k_g, k_b, k_m, k_v = jax.random.split(key, 6)

    # BasicConv defaults: 3x3 conv, stride 1, pad 1, bn=True, relu=True, bias=False.
    B, C_in, H, W = 2, 4, 16, 16
    C_out, ksize, stride, padding, dilation = 8, 3, 1, 1, 1
    bn_eps = 1e-5

    x = jax.random.normal(k_x, (B, C_in, H, W), dtype=jnp.float32)
    weight = jax.random.normal(k_w, (C_out, C_in, ksize, ksize), jnp.float32) * 0.1
    bn_params = dict(
        gamma=1.0 + 0.1 * jax.random.normal(k_g, (C_out,), jnp.float32),
        beta=0.1 * jax.random.normal(k_b, (C_out,), jnp.float32),
        mean=0.1 * jax.random.normal(k_m, (C_out,), jnp.float32),
        var=jax.random.uniform(k_v, (C_out,), jnp.float32, minval=0.5, maxval=1.5),
    )

    out = basic_conv(x, weight, conv_bias=None, stride=stride, padding=padding,
                     dilation=dilation, groups=1, bn_params=bn_params,
                     bn_eps=bn_eps, relu=True)
    out = jax.block_until_ready(out)

    ref = basic_conv_ref(x, weight, None, stride, padding, dilation,
                         bn_params, bn_eps, True)
    assert out.shape == (B, C_out, H, W)
    # bf16 matmul operands vs. f32 reference -> loosened tolerance (per review).
    assert jnp.allclose(out, ref, atol=5e-2, rtol=5e-2), "mismatch vs reference"

    print("KERNEL_OK")
</pallas_src>

<mosaic_0001>
module attributes {stable_mosaic.version = 11 : i64} {
  func.func @_conv_bn_relu_kernel(%arg0: i32, %arg1: i32, %arg2: memref<9x8x16xbf16, #tpu.memory_space<vmem>>, %arg3: memref<8x1xf32, #tpu.memory_space<vmem>>, %arg4: memref<1x1x16x512xbf16, #tpu.memory_space<vmem>>, %arg5: memref<1x1x8x384xf32, #tpu.memory_space<vmem>>) attributes {dimension_semantics = [#tpu.dimension_semantics<parallel>, #tpu.dimension_semantics<parallel>], iteration_bounds = array<i64: 2, 1>, scalar_prefetch = 0 : i64, scratch_operands = 0 : i64, tpu.core_type = #tpu.core_type<tc>, window_params = [{pipeline_mode = #tpu.pipeline_mode<synchronous>, transform_indices = @transform_0, window_bounds = array<i64: 9, 8, 16>}, {pipeline_mode = #tpu.pipeline_mode<synchronous>, transform_indices = @transform_1, window_bounds = array<i64: 8, 1>}, {transform_indices = @transform_2, window_bounds = array<i64: 1, 1, 16, 512>}, {transform_indices = @transform_3, window_bounds = array<i64: 1, 1, 8, 384>}]} {
    %c0 = arith.constant 0 : index
    %c0_0 = arith.constant 0 : index
    %c0_1 = arith.constant 0 : index
    %0 = vector.load %arg2[%c0, %c0_0, %c0_1] : memref<9x8x16xbf16, #tpu.memory_space<vmem>>, vector<1x8x16xbf16>
    %1 = vector.shape_cast %0 : vector<1x8x16xbf16> to vector<8x16xbf16>
    %c0_2 = arith.constant 0 : index
    %c0_3 = arith.constant 0 : index
    %c0_4 = arith.constant 0 : index
    %c0_5 = arith.constant 0 : index
    %2 = vector.load %arg4[%c0_2, %c0_3, %c0_4, %c0_5] : memref<1x1x16x512xbf16, #tpu.memory_space<vmem>>, vector<1x1x16x384xbf16>
    %3 = vector.shape_cast %2 : vector<1x1x16x384xbf16> to vector<16x384xbf16>
    %cst = arith.constant dense<0.000000e+00> : vector<8x384xf32>
    %4 = tpu.matmul %1, %3, %cst {dimension_numbers = #tpu.dot_dimension_numbers<[1], [0], [0], [1], [0, 0, 1, 1], [], []>} : vector<8x16xbf16>, vector<16x384xbf16>, vector<8x384xf32> -> vector<8x384xf32>
    %c1 = arith.constant 1 : index
    %c0_6 = arith.constant 0 : index
    %c0_7 = arith.constant 0 : index
    %5 = vector.load %arg2[%c1, %c0_6, %c0_7] : memref<9x8x16xbf16, #tpu.memory_space<vmem>>, vector<1x8x16xbf16>
    %6 = vector.shape_cast %5 : vector<1x8x16xbf16> to vector<8x16xbf16>
    %c0_8 = arith.constant 0 : index
    %c0_9 = arith.constant 0 : index
    %c0_10 = arith.constant 0 : index
    %c1_11 = arith.constant 1 : index
    %7 = vector.load %arg4[%c0_8, %c0_9, %c0_10, %c1_11] : memref<1x1x16x512xbf16, #tpu.memory_space<vmem>>, vector<1x1x16x384xbf16>
    %8 = vector.shape_cast %7 : vector<1x1x16x384xbf16> to vector<16x384xbf16>
    %cst_12 = arith.constant dense<0.000000e+00> : vector<8x384xf32>
    %9 = tpu.matmul %6, %8, %cst_12 {dimension_numbers = #tpu.dot_dimension_numbers<[1], [0], [0], [1], [0, 0, 1, 1], [], []>} : vector<8x16xbf16>, vector<16x384xbf16>, vector<8x384xf32> -> vector<8x384xf32>
    %10 = arith.addf %4, %9 : vector<8x384xf32>
    %c2 = arith.constant 2 : index
    %c0_13 = arith.constant 0 : index
    %c0_14 = arith.constant 0 : index
    %11 = vector.load %arg2[%c2, %c0_13, %c0_14] : memref<9x8x16xbf16, #tpu.memory_space<vmem>>, vector<1x8x16xbf16>
    %12 = vector.shape_cast %11 : vector<1x8x16xbf16> to vector<8x16xbf16>
    %c0_15 = arith.constant 0 : index
    %c0_16 = arith.constant 0 : index
    %c0_17 = arith.constant 0 : index
    %c2_18 = arith.constant 2 : index
    %13 = vector.load %arg4[%c0_15, %c0_16, %c0_17, %c2_18] : memref<1x1x16x512xbf16, #tpu.memory_space<vmem>>, vector<1x1x16x384xbf16>
    %14 = vector.shape_cast %13 : vector<1x1x16x384xbf16> to vector<16x384xbf16>
    %cst_19 = arith.constant dense<0.000000e+00> : vector<8x384xf32>
    %15 = tpu.matmul %12, %14, %cst_19 {dimension_numbers = #tpu.dot_dimension_numbers<[1], [0], [0], [1], [0, 0, 1, 1], [], []>} : vector<8x16xbf16>, vector<16x384xbf16>, vector<8x384xf32> -> vector<8x384xf32>
    %16 = arith.addf %10, %15 : vector<8x384xf32>
    %c3 = arith.constant 3 : index
    %c0_20 = arith.constant 0 : index
    %c0_21 = arith.constant 0 : index
    %17 = vector.load %arg2[%c3, %c0_20, %c0_21] : memref<9x8x16xbf16, #tpu.memory_space<vmem>>, vector<1x8x16xbf16>
    %18 = vector.shape_cast %17 : vector<1x8x16xbf16> to vector<8x16xbf16>
    %c0_22 = arith.constant 0 : index
    %c0_23 = arith.constant 0 : index
    %c0_24 = arith.constant 0 : index
    %c18 = arith.constant 18 : index
    %19 = vector.load %arg4[%c0_22, %c0_23, %c0_24, %c18] : memref<1x1x16x512xbf16, #tpu.memory_space<vmem>>, vector<1x1x16x384xbf16>
    %20 = vector.shape_cast %19 : vector<1x1x16x384xbf16> to vector<16x384xbf16>
    %cst_25 = arith.constant dense<0.000000e+00> : vector<8x384xf32>
    %21 = tpu.matmul %18, %20, %cst_25 {dimension_numbers = #tpu.dot_dimension_numbers<[1], [0], [0], [1], [0, 0, 1, 1], [], []>} : vector<8x16xbf16>, vector<16x384xbf16>, vector<8x384xf32> -> vector<8x384xf32>
    %22 = arith.addf %16, %21 : vector<8x384xf32>
    %c4 = arith.constant 4 : index
    %c0_26 = arith.constant 0 : index
    %c0_27 = arith.constant 0 : index
    %23 = vector.load %arg2[%c4, %c0_26, %c0_27] : memref<9x8x16xbf16, #tpu.memory_space<vmem>>, vector<1x8x16xbf16>
    %24 = vector.shape_cast %23 : vector<1x8x16xbf16> to vector<8x16xbf16>
    %c0_28 = arith.constant 0 : index
    %c0_29 = arith.constant 0 : index
    %c0_30 = arith.constant 0 : index
    %c19 = arith.constant 19 : index
    %25 = vector.load %arg4[%c0_28, %c0_29, %c0_30, %c19] : memref<1x1x16x512xbf16, #tpu.memory_space<vmem>>, vector<1x1x16x384xbf16>
    %26 = vector.shape_cast %25 : vector<1x1x16x384xbf16> to vector<16x384xbf16>
    %cst_31 = arith.constant dense<0.000000e+00> : vector<8x384xf32>
    %27 = tpu.matmul %24, %26, %cst_31 {dimension_numbers = #tpu.dot_dimension_numbers<[1], [0], [0], [1], [0, 0, 1, 1], [], []>} : vector<8x16xbf16>, vector<16x384xbf16>, vector<8x384xf32> -> vector<8x384xf32>
    %28 = arith.addf %22, %27 : vector<8x384xf32>
    %c5 = arith.constant 5 : index
    %c0_32 = arith.constant 0 : index
    %c0_33 = arith.constant 0 : index
    %29 = vector.load %arg2[%c5, %c0_32, %c0_33] : memref<9x8x16xbf16, #tpu.memory_space<vmem>>, vector<1x8x16xbf16>
    %30 = vector.shape_cast %29 : vector<1x8x16xbf16> to vector<8x16xbf16>
    %c0_34 = arith.constant 0 : index
    %c0_35 = arith.constant 0 : index
    %c0_36 = arith.constant 0 : index
    %c20 = arith.constant 20 : index
    %31 = vector.load %arg4[%c0_34, %c0_35, %c0_36, %c20] : memref<1x1x16x512xbf16, #tpu.memory_space<vmem>>, vector<1x1x16x384xbf16>
    %32 = vector.shape_cast %31 : vector<1x1x16x384xbf16> to vector<16x384xbf16>
    %cst_37 = arith.constant dense<0.000000e+00> : vector<8x384xf32>
    %33 = tpu.matmul %30, %32, %cst_37 {dimension_numbers = #tpu.dot_dimension_numbers<[1], [0], [0], [1], [0, 0, 1, 1], [], []>} : vector<8x16xbf16>, vector<16x384xbf16>, vector<8x384xf32> -> vector<8x384xf32>
    %34 = arith.addf %28, %33 : vector<8x384xf32>
    %c6 = arith.constant 6 : index
    %c0_38 = arith.constant 0 : index
    %c0_39 = arith.constant 0 : index
    %35 = vector.load %arg2[%c6, %c0_38, %c0_39] : memref<9x8x16xbf16, #tpu.memory_space<vmem>>, vector<1x8x16xbf16>
    %36 = vector.shape_cast %35 : vector<1x8x16xbf16> to vector<8x16xbf16>
    %c0_40 = arith.constant 0 : index
    %c0_41 = arith.constant 0 : index
    %c0_42 = arith.constant 0 : index
    %c36 = arith.constant 36 : index
    %37 = vector.load %arg4[%c0_40, %c0_41, %c0_42, %c36] : memref<1x1x16x512xbf16, #tpu.memory_space<vmem>>, vector<1x1x16x384xbf16>
    %38 = vector.shape_cast %37 : vector<1x1x16x384xbf16> to vector<16x384xbf16>
    %cst_43 = arith.constant dense<0.000000e+00> : vector<8x384xf32>
    %39 = tpu.matmul %36, %38, %cst_43 {dimension_numbers = #tpu.dot_dimension_numbers<[1], [0], [0], [1], [0, 0, 1, 1], [], []>} : vector<8x16xbf16>, vector<16x384xbf16>, vector<8x384xf32> -> vector<8x384xf32>
    %40 = arith.addf %34, %39 : vector<8x384xf32>
    %c7 = arith.constant 7 : index
    %c0_44 = arith.constant 0 : index
    %c0_45 = arith.constant 0 : index
    %41 = vector.load %arg2[%c7, %c0_44, %c0_45] : memref<9x8x16xbf16, #tpu.memory_space<vmem>>, vector<1x8x16xbf16>
    %42 = vector.shape_cast %41 : vector<1x8x16xbf16> to vector<8x16xbf16>
    %c0_46 = arith.constant 0 : index
    %c0_47 = arith.constant 0 : index
    %c0_48 = arith.constant 0 : index
    %c37 = arith.constant 37 : index
    %43 = vector.load %arg4[%c0_46, %c0_47, %c0_48, %c37] : memref<1x1x16x512xbf16, #tpu.memory_space<vmem>>, vector<1x1x16x384xbf16>
    %44 = vector.shape_cast %43 : vector<1x1x16x384xbf16> to vector<16x384xbf16>
    %cst_49 = arith.constant dense<0.000000e+00> : vector<8x384xf32>
    %45 = tpu.matmul %42, %44, %cst_49 {dimension_numbers = #tpu.dot_dimension_numbers<[1], [0], [0], [1], [0, 0, 1, 1], [], []>} : vector<8x16xbf16>, vector<16x384xbf16>, vector<8x384xf32> -> vector<8x384xf32>
    %46 = arith.addf %40, %45 : vector<8x384xf32>
    %c8 = arith.constant 8 : index
    %c0_50 = arith.constant 0 : index
    %c0_51 = arith.constant 0 : index
    %47 = vector.load %arg2[%c8, %c0_50, %c0_51] : memref<9x8x16xbf16, #tpu.memory_space<vmem>>, vector<1x8x16xbf16>
    %48 = vector.shape_cast %47 : vector<1x8x16xbf16> to vector<8x16xbf16>
    %c0_52 = arith.constant 0 : index
    %c0_53 = arith.constant 0 : index
    %c0_54 = arith.constant 0 : index
    %c38 = arith.constant 38 : index
    %49 = vector.load %arg4[%c0_52, %c0_53, %c0_54, %c38] : memref<1x1x16x512xbf16, #tpu.memory_space<vmem>>, vector<1x1x16x384xbf16>
    %50 = vector.shape_cast %49 : vector<1x1x16x384xbf16> to vector<16x384xbf16>
    %cst_55 = arith.constant dense<0.000000e+00> : vector<8x384xf32>
    %51 = tpu.matmul %48, %50, %cst_55 {dimension_numbers = #tpu.dot_dimension_numbers<[1], [0], [0], [1], [0, 0, 1, 1], [], []>} : vector<8x16xbf16>, vector<16x384xbf16>, vector<8x384xf32> -> vector<8x384xf32>
    %52 = arith.addf %46, %51 : vector<8x384xf32>
    %c0_56 = arith.constant 0 : index
    %c0_57 = arith.constant 0 : index
    %53 = vector.load %arg3[%c0_56, %c0_57] : memref<8x1xf32, #tpu.memory_space<vmem>>, vector<8x1xf32>
    %54 = vector.broadcast %53 : vector<8x1xf32> to vector<8x384xf32>
    %55 = arith.addf %52, %54 : vector<8x384xf32>
    %cst_58 = arith.constant 0.000000e+00 : f32
    %56 = vector.broadcast %cst_58 : f32 to vector<8x384xf32>
    %57 = arith.maximumf %55, %56 : vector<8x384xf32>
    %c0_59 = arith.constant 0 : index
    %c0_60 = arith.constant 0 : index
    %c0_61 = arith.constant 0 : index
    %c0_62 = arith.constant 0 : index
    %58 = vector.load %arg5[%c0_59, %c0_60, %c0_61, %c0_62] : memref<1x1x8x384xf32, #tpu.memory_space<vmem>>, vector<1x1x8x384xf32>
    %59 = vector.shape_cast %58 : vector<1x1x8x384xf32> to vector<8x384xf32>
    %60 = vector.shape_cast %57 : vector<8x384xf32> to vector<1x1x8x384xf32>
    tpu.vector_store %arg5[%c0_59, %c0_60, %c0_61, %c0_62], %60 {strides = array<i32>} : memref<1x1x8x384xf32, #tpu.memory_space<vmem>>, vector<1x1x8x384xf32>,
    return
  }
  func.func @transform_0(%arg0: i32, %arg1: i32) -> (i32, i32, i32) {
    %c0_i32 = arith.constant 0 : i32
    %c0_i32_0 = arith.constant 0 : i32
    %c0_i32_1 = arith.constant 0 : i32
    %c0_i32_2 = arith.constant 0 : i32
    return %c0_i32, %c0_i32_0, %c0_i32_1 : i32, i32, i32
  }
  func.func @transform_1(%arg0: i32, %arg1: i32) -> (i32, i32) {
    %c0_i32 = arith.constant 0 : i32
    %c0_i32_0 = arith.constant 0 : i32
    %c0_i32_1 = arith.constant 0 : i32
    return %c0_i32, %c0_i32_0 : i32, i32
  }
  func.func @transform_2(%arg0: i32, %arg1: i32) -> (i32, i32, i32, i32) {
    %c0_i32 = arith.constant 0 : i32
    %c0_i32_0 = arith.constant 0 : i32
    %c0_i32_1 = arith.constant 0 : i32
    return %arg0, %arg1, %c0_i32, %c0_i32_0 : i32, i32, i32, i32
  }
  func.func @transform_3(%arg0: i32, %arg1: i32) -> (i32, i32, i32, i32) {
    %c0_i32 = arith.constant 0 : i32
    %c0_i32_0 = arith.constant 0 : i32
    %c0_i32_1 = arith.constant 0 : i32
    return %arg0, %arg1, %c0_i32, %c0_i32_0 : i32, i32, i32, i32
  }
}

module attributes {stable_mosaic.version = 11 : i64} {
  func.func @_conv_bn_relu_kernel(%arg0: i32, %arg1: i32, %arg2: memref<9x8x16xbf16, #tpu.memory_space<vmem>>, %arg3: memref<8x1xf32, #tpu.memory_space<vmem>>, %arg4: memref<1x1x16x512xbf16, #tpu.memory_space<vmem>>, %arg5: memref<1x1x8x384xf32, #tpu.memory_space<vmem>>) attributes {dimension_semantics = [#tpu.dimension_semantics<parallel>, #tpu.dimension_semantics<parallel>], iteration_bounds = array<i64: 2, 1>, scalar_prefetch = 0 : i64, scratch_operands = 0 : i64, tpu.core_type = #tpu.core_type<tc>, window_params = [{pipeline_mode = #tpu.pipeline_mode<synchronous>, transform_indices = @transform_0, window_bounds = array<i64: 9, 8, 16>}, {pipeline_mode = #tpu.pipeline_mode<synchronous>, transform_indices = @transform_1, window_bounds = array<i64: 8, 1>}, {transform_indices = @transform_2, window_bounds = array<i64: 1, 1, 16, 512>}, {transform_indices = @transform_3, window_bounds = array<i64: 1, 1, 8, 384>}]} {
    %c0 = arith.constant 0 : index
    %c0_0 = arith.constant 0 : index
    %c0_1 = arith.constant 0 : index
    %0 = vector.load %arg2[%c0, %c0_0, %c0_1] : memref<9x8x16xbf16, #tpu.memory_space<vmem>>, vector<1x8x16xbf16>
    %1 = vector.shape_cast %0 : vector<1x8x16xbf16> to vector<8x16xbf16>
    %c0_2 = arith.constant 0 : index
    %c0_3 = arith.constant 0 : index
    %c0_4 = arith.constant 0 : index
    %c0_5 = arith.constant 0 : index
    %2 = vector.load %arg4[%c0_2, %c0_3, %c0_4, %c0_5] : memref<1x1x16x512xbf16, #tpu.memory_space<vmem>>, vector<1x1x16x384xbf16>
    %3 = vector.shape_cast %2 : vector<1x1x16x384xbf16> to vector<16x384xbf16>
    %cst = arith.constant dense<0.000000e+00> : vector<8x384xf32>
    %4 = tpu.matmul %1, %3, %cst {dimension_numbers = #tpu.dot_dimension_numbers<[1], [0], [0], [1], [0, 0, 1, 1], [], []>} : vector<8x16xbf16>, vector<16x384xbf16>, vector<8x384xf32> -> vector<8x384xf32>
    %c1 = arith.constant 1 : index
    %c0_6 = arith.constant 0 : index
    %c0_7 = arith.constant 0 : index
    %5 = vector.load %arg2[%c1, %c0_6, %c0_7] : memref<9x8x16xbf16, #tpu.memory_space<vmem>>, vector<1x8x16xbf16>
    %6 = vector.shape_cast %5 : vector<1x8x16xbf16> to vector<8x16xbf16>
    %c0_8 = arith.constant 0 : index
    %c0_9 = arith.constant 0 : index
    %c0_10 = arith.constant 0 : index
    %c1_11 = arith.constant 1 : index
    %7 = vector.load %arg4[%c0_8, %c0_9, %c0_10, %c1_11] : memref<1x1x16x512xbf16, #tpu.memory_space<vmem>>, vector<1x1x16x384xbf16>
    %8 = vector.shape_cast %7 : vector<1x1x16x384xbf16> to vector<16x384xbf16>
    %cst_12 = arith.constant dense<0.000000e+00> : vector<8x384xf32>
    %9 = tpu.matmul %6, %8, %cst_12 {dimension_numbers = #tpu.dot_dimension_numbers<[1], [0], [0], [1], [0, 0, 1, 1], [], []>} : vector<8x16xbf16>, vector<16x384xbf16>, vector<8x384xf32> -> vector<8x384xf32>
    %10 = arith.addf %4, %9 : vector<8x384xf32>
    %c2 = arith.constant 2 : index
    %c0_13 = arith.constant 0 : index
    %c0_14 = arith.constant 0 : index
    %11 = vector.load %arg2[%c2, %c0_13, %c0_14] : memref<9x8x16xbf16, #tpu.memory_space<vmem>>, vector<1x8x16xbf16>
    %12 = vector.shape_cast %11 : vector<1x8x16xbf16> to vector<8x16xbf16>
    %c0_15 = arith.constant 0 : index
    %c0_16 = arith.constant 0 : index
    %c0_17 = arith.constant 0 : index
    %c2_18 = arith.constant 2 : index
    %13 = vector.load %arg4[%c0_15, %c0_16, %c0_17, %c2_18] : memref<1x1x16x512xbf16, #tpu.memory_space<vmem>>, vector<1x1x16x384xbf16>
    %14 = vector.shape_cast %13 : vector<1x1x16x384xbf16> to vector<16x384xbf16>
    %cst_19 = arith.constant dense<0.000000e+00> : vector<8x384xf32>
    %15 = tpu.matmul %12, %14, %cst_19 {dimension_numbers = #tpu.dot_dimension_numbers<[1], [0], [0], [1], [0, 0, 1, 1], [], []>} : vector<8x16xbf16>, vector<16x384xbf16>, vector<8x384xf32> -> vector<8x384xf32>
    %16 = arith.addf %10, %15 : vector<8x384xf32>
    %c3 = arith.constant 3 : index
    %c0_20 = arith.constant 0 : index
    %c0_21 = arith.constant 0 : index
    %17 = vector.load %arg2[%c3, %c0_20, %c0_21] : memref<9x8x16xbf16, #tpu.memory_space<vmem>>, vector<1x8x16xbf16>
    %18 = vector.shape_cast %17 : vector<1x8x16xbf16> to vector<8x16xbf16>
    %c0_22 = arith.constant 0 : index
    %c0_23 = arith.constant 0 : index
    %c0_24 = arith.constant 0 : index
    %c18 = arith.constant 18 : index
    %19 = vector.load %arg4[%c0_22, %c0_23, %c0_24, %c18] : memref<1x1x16x512xbf16, #tpu.memory_space<vmem>>, vector<1x1x16x384xbf16>
    %20 = vector.shape_cast %19 : vector<1x1x16x384xbf16> to vector<16x384xbf16>
    %cst_25 = arith.constant dense<0.000000e+00> : vector<8x384xf32>
    %21 = tpu.matmul %18, %20, %cst_25 {dimension_numbers = #tpu.dot_dimension_numbers<[1], [0], [0], [1], [0, 0, 1, 1], [], []>} : vector<8x16xbf16>, vector<16x384xbf16>, vector<8x384xf32> -> vector<8x384xf32>
    %22 = arith.addf %16, %21 : vector<8x384xf32>
    %c4 = arith.constant 4 : index
    %c0_26 = arith.constant 0 : index
    %c0_27 = arith.constant 0 : index
    %23 = vector.load %arg2[%c4, %c0_26, %c0_27] : memref<9x8x16xbf16, #tpu.memory_space<vmem>>, vector<1x8x16xbf16>
    %24 = vector.shape_cast %23 : vector<1x8x16xbf16> to vector<8x16xbf16>
    %c0_28 = arith.constant 0 : index
    %c0_29 = arith.constant 0 : index
    %c0_30 = arith.constant 0 : index
    %c19 = arith.constant 19 : index
    %25 = vector.load %arg4[%c0_28, %c0_29, %c0_30, %c19] : memref<1x1x16x512xbf16, #tpu.memory_space<vmem>>, vector<1x1x16x384xbf16>
    %26 = vector.shape_cast %25 : vector<1x1x16x384xbf16> to vector<16x384xbf16>
    %cst_31 = arith.constant dense<0.000000e+00> : vector<8x384xf32>
    %27 = tpu.matmul %24, %26, %cst_31 {dimension_numbers = #tpu.dot_dimension_numbers<[1], [0], [0], [1], [0, 0, 1, 1], [], []>} : vector<8x16xbf16>, vector<16x384xbf16>, vector<8x384xf32> -> vector<8x384xf32>
    %28 = arith.addf %22, %27 : vector<8x384xf32>
    %c5 = arith.constant 5 : index
    %c0_32 = arith.constant 0 : index
    %c0_33 = arith.constant 0 : index
    %29 = vector.load %arg2[%c5, %c0_32, %c0_33] : memref<9x8x16xbf16, #tpu.memory_space<vmem>>, vector<1x8x16xbf16>
    %30 = vector.shape_cast %29 : vector<1x8x16xbf16> to vector<8x16xbf16>
    %c0_34 = arith.constant 0 : index
    %c0_35 = arith.constant 0 : index
    %c0_36 = arith.constant 0 : index
    %c20 = arith.constant 20 : index
    %31 = vector.load %arg4[%c0_34, %c0_35, %c0_36, %c20] : memref<1x1x16x512xbf16, #tpu.memory_space<vmem>>, vector<1x1x16x384xbf16>
    %32 = vector.shape_cast %31 : vector<1x1x16x384xbf16> to vector<16x384xbf16>
    %cst_37 = arith.constant dense<0.000000e+00> : vector<8x384xf32>
    %33 = tpu.matmul %30, %32, %cst_37 {dimension_numbers = #tpu.dot_dimension_numbers<[1], [0], [0], [1], [0, 0, 1, 1], [], []>} : vector<8x16xbf16>, vector<16x384xbf16>, vector<8x384xf32> -> vector<8x384xf32>
    %34 = arith.addf %28, %33 : vector<8x384xf32>
    %c6 = arith.constant 6 : index
    %c0_38 = arith.constant 0 : index
    %c0_39 = arith.constant 0 : index
    %35 = vector.load %arg2[%c6, %c0_38, %c0_39] : memref<9x8x16xbf16, #tpu.memory_space<vmem>>, vector<1x8x16xbf16>
    %36 = vector.shape_cast %35 : vector<1x8x16xbf16> to vector<8x16xbf16>
    %c0_40 = arith.constant 0 : index
    %c0_41 = arith.constant 0 : index
    %c0_42 = arith.constant 0 : index
    %c36 = arith.constant 36 : index
    %37 = vector.load %arg4[%c0_40, %c0_41, %c0_42, %c36] : memref<1x1x16x512xbf16, #tpu.memory_space<vmem>>, vector<1x1x16x384xbf16>
    %38 = vector.shape_cast %37 : vector<1x1x16x384xbf16> to vector<16x384xbf16>
    %cst_43 = arith.constant dense<0.000000e+00> : vector<8x384xf32>
    %39 = tpu.matmul %36, %38, %cst_43 {dimension_numbers = #tpu.dot_dimension_numbers<[1], [0], [0], [1], [0, 0, 1, 1], [], []>} : vector<8x16xbf16>, vector<16x384xbf16>, vector<8x384xf32> -> vector<8x384xf32>
    %40 = arith.addf %34, %39 : vector<8x384xf32>
    %c7 = arith.constant 7 : index
    %c0_44 = arith.constant 0 : index
    %c0_45 = arith.constant 0 : index
    %41 = vector.load %arg2[%c7, %c0_44, %c0_45] : memref<9x8x16xbf16, #tpu.memory_space<vmem>>, vector<1x8x16xbf16>
    %42 = vector.shape_cast %41 : vector<1x8x16xbf16> to vector<8x16xbf16>
    %c0_46 = arith.constant 0 : index
    %c0_47 = arith.constant 0 : index
    %c0_48 = arith.constant 0 : index
    %c37 = arith.constant 37 : index
    %43 = vector.load %arg4[%c0_46, %c0_47, %c0_48, %c37] : memref<1x1x16x512xbf16, #tpu.memory_space<vmem>>, vector<1x1x16x384xbf16>
    %44 = vector.shape_cast %43 : vector<1x1x16x384xbf16> to vector<16x384xbf16>
    %cst_49 = arith.constant dense<0.000000e+00> : vector<8x384xf32>
    %45 = tpu.matmul %42, %44, %cst_49 {dimension_numbers = #tpu.dot_dimension_numbers<[1], [0], [0], [1], [0, 0, 1, 1], [], []>} : vector<8x16xbf16>, vector<16x384xbf16>, vector<8x384xf32> -> vector<8x384xf32>
    %46 = arith.addf %40, %45 : vector<8x384xf32>
    %c8 = arith.constant 8 : index
    %c0_50 = arith.constant 0 : index
    %c0_51 = arith.constant 0 : index
    %47 = vector.load %arg2[%c8, %c0_50, %c0_51] : memref<9x8x16xbf16, #tpu.memory_space<vmem>>, vector<1x8x16xbf16>
    %48 = vector.shape_cast %47 : vector<1x8x16xbf16> to vector<8x16xbf16>
    %c0_52 = arith.constant 0 : index
    %c0_53 = arith.constant 0 : index
    %c0_54 = arith.constant 0 : index
    %c38 = arith.constant 38 : index
    %49 = vector.load %arg4[%c0_52, %c0_53, %c0_54, %c38] : memref<1x1x16x512xbf16, #tpu.memory_space<vmem>>, vector<1x1x16x384xbf16>
    %50 = vector.shape_cast %49 : vector<1x1x16x384xbf16> to vector<16x384xbf16>
    %cst_55 = arith.constant dense<0.000000e+00> : vector<8x384xf32>
    %51 = tpu.matmul %48, %50, %cst_55 {dimension_numbers = #tpu.dot_dimension_numbers<[1], [0], [0], [1], [0, 0, 1, 1], [], []>} : vector<8x16xbf16>, vector<16x384xbf16>, vector<8x384xf32> -> vector<8x384xf32>
    %52 = arith.addf %46, %51 : vector<8x384xf32>
    %c0_56 = arith.constant 0 : index
    %c0_57 = arith.constant 0 : index
    %53 = vector.load %arg3[%c0_56, %c0_57] : memref<8x1xf32, #tpu.memory_space<vmem>>, vector<8x1xf32>
    %54 = vector.broadcast %53 : vector<8x1xf32> to vector<8x384xf32>
    %55 = arith.addf %52, %54 : vector<8x384xf32>
    %cst_58 = arith.constant 0.000000e+00 : f32
    %56 = vector.broadcast %cst_58 : f32 to vector<8x384xf32>
    %57 = arith.maximumf %55, %56 : vector<8x384xf32>
    %c0_59 = arith.constant 0 : index
    %c0_60 = arith.constant 0 : index
    %c0_61 = arith.constant 0 : index
    %c0_62 = arith.constant 0 : index
    %58 = vector.load %arg5[%c0_59, %c0_60, %c0_61, %c0_62] : memref<1x1x8x384xf32, #tpu.memory_space<vmem>>, vector<1x1x8x384xf32>
    %59 = vector.shape_cast %58 : vector<1x1x8x384xf32> to vector<8x384xf32>
    %60 = vector.shape_cast %57 : vector<8x384xf32> to vector<1x1x8x384xf32>
    tpu.vector_store %arg5[%c0_59, %c0_60, %c0_61, %c0_62], %60 {strides = array<i32>} : memref<1x1x8x384xf32, #tpu.memory_space<vmem>>, vector<1x1x8x384xf32>,
    return
  }
  func.func @transform_0(%arg0: i32, %arg1: i32) -> (i32, i32, i32) {
    %c0_i32 = arith.constant 0 : i32
    %c0_i32_0 = arith.constant 0 : i32
    %c0_i32_1 = arith.constant 0 : i32
    %c0_i32_2 = arith.constant 0 : i32
    return %c0_i32, %c0_i32_0, %c0_i32_1 : i32, i32, i32
  }
  func.func @transform_1(%arg0: i32, %arg1: i32) -> (i32, i32) {
    %c0_i32 = arith.constant 0 : i32
    %c0_i32_0 = arith.constant 0 : i32
    %c0_i32_1 = arith.constant 0 : i32
    return %c0_i32, %c0_i32_0 : i32, i32
  }
  func.func @transform_2(%arg0: i32, %arg1: i32) -> (i32, i32, i32, i32) {
    %c0_i32 = arith.constant 0 : i32
    %c0_i32_0 = arith.constant 0 : i32
    %c0_i32_1 = arith.constant 0 : i32
    return %arg0, %arg1, %c0_i32, %c0_i32_0 : i32, i32, i32, i32
  }
  func.func @transform_3(%arg0: i32, %arg1: i32) -> (i32, i32, i32, i32) {
    %c0_i32 = arith.constant 0 : i32
    %c0_i32_0 = arith.constant 0 : i32
    %c0_i32_1 = arith.constant 0 : i32
    return %arg0, %arg1, %c0_i32, %c0_i32_0 : i32, i32, i32, i32
  }
}

</mosaic_0001>

<llo_original>
// kernel: tpu_custom_call.1
$region0: #{tpu_custom_call.1}
  #allocation0 [shape = 'u32[]', space=smem, size = 0x4, offset = 0x4, fixed_abs, tag = 'smem constant byte address 0x4 - core index']
  #allocation1 [shape = 'u32[72,128]{1,0:T(1,128)}', space=vmem, size = 0x9000, scoped, tag = 'internal scratch']
  %s0 = inlined_call_operand.hbm [shape: bf16[9,8,16], index: 0, kind: input, shape index: {}]
  %s1 = inlined_call_operand.vmem [shape: f32[8,1], index: 1, kind: input, shape index: {}]
  %s2 = inlined_call_operand.hbm [shape: bf16[2,1,16,512], index: 2, kind: input, shape index: {}]
  %s3 = inlined_call_operand.hbm [shape: f32[2,1,8,384], index: 3, kind: output, shape index: {}]
  %s4 = sld [smem:[#allocation0]]
  $region53: #{tpu_custom_call.1} parent=0
    _
  %s6 = ssub.s32 1, %s4
  %s7 = scalar_select 0, %s6, %s4
  $region1: #{tpu_custom_call.1} parent=0
    #allocation2 [shape = 'u8[18432]{0}', space=vmem, size = 0x4800, scoped, tag = 'input window, operand 0, single buffered']
    #allocation3 [shape = 's32[2]{0}', space=sflag, size = 0x8, scoped, tag = 'scoped memory for tpu_custom_call.1']
    #allocation4 [shape = 's32[2]{0}', space=sflag, size = 0x8, scoped, tag = 'scoped memory for tpu_custom_call.1']
    #allocation5 [shape = 'u8[32768]{0}', space=vmem, size = 0x8000, scoped, tag = 'input window, operand 2']
    #allocation6 [shape = 's32[2]{0}', space=sflag, size = 0x8, scoped, tag = 'scoped memory for tpu_custom_call.1']
    #allocation7 [shape = 'u8[24576]{0}', space=vmem, size = 0x6000, scoped, tag = 'output window, operand 0']
    %8 = vsyncpa [#allocation3], 0
    %9 = vsyncpa [#allocation6], 0
    %s10 = scalar_lea.sflag [#allocation6], 1
    %11 = vsyncpa %s10, 0
    %12 = vsyncpa [#allocation4], 0
    %s13 = scalar_lea.sflag [#allocation4], 1
    %14 = vsyncpa %s13, 0
    loop: start=0, step=1, limit=4
    $region2: #{tpu_custom_call.1} parent=1 // loop_pre_header
      _
    $region3: #{tpu_custom_call.1} parent=1 // loop_header
      %s16 = sphi 0, %s20
      %p17 = scmp.ge.s32.totalorder %s16, 4
      %s23 = sphi 0, %s35
      %s24 = sphi 0, %s31
      %s25 = sphi 0, %s23
      %s26 = sphi 0, %s24
      %s27 = sphi 0, %s25
      %s28 = sphi 0, %s26
      %s36 = sphi 0, %s36
      %s38 = sphi 0, %s36
      %s39 = sphi 0, %s38
      %s53 = sphi 0, %s39
      %s57 = sphi 0, %s57
      %s59 = sphi 0, %s57
      %s60 = sphi 0, %s59
      %s74 = sphi 0, %s60
      %s82 = sphi 0, %s84
      %s85 = sphi 0, %s82
      %s86 = sphi 0, %s85
      %s102 = sphi 0, %s86
      %s110 = sphi 0, %s112
      %s113 = sphi 0, %s110
      %s114 = sphi 0, %s113
      %s130 = sphi 0, %s114
    $region4: #{tpu_custom_call.1} parent=1 // loop_header_branch
      %19 = sbr.rel (%p17) target = $region8
    $region5: #{tpu_custom_call.1} parent=1 // loop_body
      %s21 = ssub.s32 %s16, 1
      %s22 = ssub.s32 %s16, 2
      %s29 = sadd.s32 1, %s24
      %p30 = scmp.ge.s32.totalorder %s29, 1
      %s31 = scalar_select %p30, 0, %s29
      %s32 = sadd.s32 1, %s23
      %s33 = scalar_select %p30, %s32, %s23
      %p34 = scmp.ge.s32.totalorder %s33, 2
      %s35 = scalar_select %p34, 0, %s33
      %s37 = sadd.s32 %s36, 1
      %p40 = scmp.eq.s32.totalorder %s16, 1
      %p41 = scmp.ne.s32.totalorder %s36, %s38
      %p42 = scmp.eq.s32.totalorder %s16, 0
      %p43 = por %p41, %p42
      %p44 = scmp.ne.s32.totalorder %s36, %s38
      %p45 = scmp.eq.s32.totalorder %s21, 1
      %p46 = por %p44, %p45
      %p47 = scmp.ne.s32.totalorder %s38, %s39
      %p48 = scmp.eq.s32.totalorder %s21, 0
      %p49 = por %p47, %p48
      %p50 = scmp.ne.s32.totalorder %s38, %s39
      %p51 = scmp.eq.s32.totalorder %s22, 1
      %p52 = por %p50, %p51
      %p54 = scmp.ne.s32.totalorder %s39, %s53
      %p55 = scmp.eq.s32.totalorder %s22, 0
      %p56 = por %p54, %p55
      %s58 = sadd.s32 %s57, 1
      %p61 = scmp.eq.s32.totalorder %s16, 1
      %p62 = scmp.ne.s32.totalorder %s57, %s59
      %p63 = scmp.eq.s32.totalorder %s16, 0
      %p64 = por %p62, %p63
      %p65 = scmp.ne.s32.totalorder %s57, %s59
      %p66 = scmp.eq.s32.totalorder %s21, 1
      %p67 = por %p65, %p66
      %p68 = scmp.ne.s32.totalorder %s59, %s60
      %p69 = scmp.eq.s32.totalorder %s21, 0
      %p70 = por %p68, %p69
      %p71 = scmp.ne.s32.totalorder %s59, %s60
      %p72 = scmp.eq.s32.totalorder %s22, 1
      %p73 = por %p71, %p72
      %p75 = scmp.ne.s32.totalorder %s60, %s74
      %p76 = scmp.eq.s32.totalorder %s22, 0
      %p77 = por %p75, %p76
      %s78 = ssub.s32 %s23, %s35
      %s79 = ssub.s32 %s24, %s31
      %s80 = sor.u32 %s78, %s79
      %p81 = scmp.eq.s32.totalorder %s80, 0
      %s83 = sadd.s32 %s82, 1
      %s84 = scalar_select %p81, %s82, %s83
      %p87 = pneg %p81
      %p88 = scmp.eq.s32.totalorder %s16, 1
      %p89 = por %p87, %p88
      %p90 = scmp.ne.s32.totalorder %s82, %s85
      %p91 = scmp.eq.s32.totalorder %s16, 0
      %p92 = por %p90, %p91
      %p93 = scmp.ne.s32.totalorder %s82, %s85
      %p94 = scmp.eq.s32.totalorder %s21, 1
      %p95 = por %p93, %p94
      %p96 = scmp.ne.s32.totalorder %s85, %s86
      %p97 = scmp.eq.s32.totalorder %s21, 0
      %p98 = por %p96, %p97
      %p99 = scmp.ne.s32.totalorder %s85, %s86
      %p100 = scmp.eq.s32.totalorder %s22, 1
      %p101 = por %p99, %p100
      %p103 = scmp.ne.s32.totalorder %s86, %s102
      %p104 = scmp.eq.s32.totalorder %s22, 0
      %p105 = por %p103, %p104
      %s106 = ssub.s32 %s23, %s35
      %s107 = ssub.s32 %s24, %s31
      %s108 = sor.u32 %s106, %s107
      %p109 = scmp.eq.s32.totalorder %s108, 0
      %s111 = sadd.s32 %s110, 1
      %s112 = scalar_select %p109, %s110, %s111
      %p115 = pneg %p109
      %p116 = scmp.eq.s32.totalorder %s16, 1
      %p117 = por %p115, %p116
      %p118 = scmp.ne.s32.totalorder %s110, %s113
      %p119 = scmp.eq.s32.totalorder %s16, 0
      %p120 = por %p118, %p119
      %p121 = scmp.ne.s32.totalorder %s110, %s113
      %p122 = scmp.eq.s32.totalorder %s21, 1
      %p123 = por %p121, %p122
      %p124 = scmp.ne.s32.totalorder %s113, %s114
      %p125 = scmp.eq.s32.totalorder %s21, 0
      %p126 = por %p124, %p125
      %p127 = scmp.ne.s32.totalorder %s113, %s114
      %p128 = scmp.eq.s32.totalorder %s22, 1
      %p129 = por %p127, %p128
      %p131 = scmp.ne.s32.totalorder %s114, %s130
      %p132 = scmp.eq.s32.totalorder %s22, 0
      %p133 = por %p131, %p132
      %p134 = scmp.le.s32.totalorder 1, %s16
      %p135 = scmp.lt.s32.totalorder %s16, 3
      %p136 = pnand %p134, %p135
      %p137 = pneg %p136
      // Predicated region
      $region9: #{tpu_custom_call.1} parent=5 // pred_check
        _
      $region10: #{tpu_custom_call.1} parent=5 // pred_check_branch
        %139 = sbr.rel (%p136) target = $region12
      $region11: #{tpu_custom_call.1} parent=5 // pred_region
        %s140 = ssub.s32 %s16, 1
        // Predicated region
        $region13: #{tpu_custom_call.1} parent=11 // pred_check
          %p141 = pneg %p49
        $region14: #{tpu_custom_call.1} parent=11 // pred_check_branch
          %143 = sbr.rel (%p141) target = $region16
        $region15: #{tpu_custom_call.1} parent=11 // pred_region
          %145 = vsyncadd [#allocation3], 0
          %s146 = sshll.u32 %s0, 4
          %s147 = int_to_ptr.hbm [resolvable:$true] %s146
          %s148 = sshll.u32 [#allocation2], 4
          %s149 = int_to_ptr.vmem [resolvable:$true] %s148
          %154 = dma.hbm_to_vmem [thread:$0]  %s147, 576, %s149, [#allocation3], 64, 64, 4
        $region16: #{tpu_custom_call.1} parent=11 // pred_fallthru
          _
        // Predicated region
        $region17: #{tpu_custom_call.1} parent=11 // pred_check
          %p155 = pneg %p70
        $region18: #{tpu_custom_call.1} parent=11 // pred_check_branch
          %157 = sbr.rel (%p155) target = $region20
        $region19: #{tpu_custom_call.1} parent=11 // pred_region
          _
        $region20: #{tpu_custom_call.1} parent=11 // pred_fallthru
          _
      $region12: #{tpu_custom_call.1} parent=5 // pred_fallthru
        _
      %p158 = scmp.lt.s32.totalorder %s16, 2
      // Predicated region
      $region21: #{tpu_custom_call.1} parent=5 // pred_check
        %p159 = pneg %p158
      $region22: #{tpu_custom_call.1} parent=5 // pred_check_branch
        %161 = sbr.rel (%p159) target = $region24
      $region23: #{tpu_custom_call.1} parent=5 // pred_region
        // Predicated region
        $region25: #{tpu_custom_call.1} parent=23 // pred_check
          %p162 = pneg %p92
        $region26: #{tpu_custom_call.1} parent=23 // pred_check_branch
          %164 = sbr.rel (%p162) target = $region28
        $region27: #{tpu_custom_call.1} parent=23 // pred_region
          %s165 = sand.u32 %s82, 1
          %s166 = scalar_lea.sflag [#allocation6], %s165
          %s167 = sand.u32 %s82, 1
          %s168 = smul.addr %s167, 32
          %s169 = scalar_lea.vmem [#allocation5], %s168
          %171 = vsyncadd %s166, 0
          %s172 = smul.addr %s24, 8
          %s173 = smul.addr %s23, 8
          %s174 = sadd.s32 %s172, %s173
          %s175 = smul.addr %s174, 4
          %s176 = scalar_lea.hbm %s2, %s175
          %s177 = sshll.u32 %s176, 4
          %s178 = int_to_ptr.hbm [resolvable:$true] %s177
          %s179 = sshll.u32 %s169, 4
          %s180 = int_to_ptr.vmem [resolvable:$true] %s179
          %185 = dma.hbm_to_vmem [thread:$0]  %s178, 512, %s180, %s166, 256, 256, 16
        $region28: #{tpu_custom_call.1} parent=23 // pred_fallthru
          _
      $region24: #{tpu_custom_call.1} parent=5 // pred_fallthru
        _
      %p186 = scmp.le.s32.totalorder 1, %s16
      %p187 = scmp.lt.s32.totalorder %s16, 3
      %p188 = pnand %p186, %p187
      %p189 = pneg %p188
      // Predicated region
      $region29: #{tpu_custom_call.1} parent=5 // pred_check
        _
      $region30: #{tpu_custom_call.1} parent=5 // pred_check_branch
        %191 = sbr.rel (%p188) target = $region32
      $region31: #{tpu_custom_call.1} parent=5 // pred_region
        %s192 = ssub.s32 %s16, 1
        // Predicated region
        $region33: #{tpu_custom_call.1} parent=31 // pred_check
          %p193 = pneg %p49
        $region34: #{tpu_custom_call.1} parent=31 // pred_check_branch
          %195 = sbr.rel (%p193) target = $region36
        $region35: #{tpu_custom_call.1} parent=31 // pred_region
          %197 = dma.done [#allocation3], 576
        $region36: #{tpu_custom_call.1} parent=31 // pred_fallthru
          _
        %s198 = sand.u32 %s85, 1
        %s199 = scalar_lea.sflag [#allocation6], %s198
        %s200 = sand.u32 %s85, 1
        %s201 = smul.addr %s200, 32
        %s202 = scalar_lea.vmem [#allocation5], %s201
        // Predicated region
        $region37: #{tpu_custom_call.1} parent=31 // pred_check
          %p203 = pneg %p98
        $region38: #{tpu_custom_call.1} parent=31 // pred_check_branch
          %205 = sbr.rel (%p203) target = $region40
        $region39: #{tpu_custom_call.1} parent=31 // pred_region
          %207 = dma.done %s199, 512
        $region40: #{tpu_custom_call.1} parent=31 // pred_fallthru
          _
        %p208 = pneg %p49
        %p209 = pneg %p46
        %p210 = pneg %p70
        %p211 = pneg %p67
        %s212 = sand.u32 %s85, 1
        %s213 = scalar_lea.sflag [#allocation6], %s212
        %s214 = sand.u32 %s85, 1
        %s215 = smul.addr %s214, 32
        %s216 = scalar_lea.vmem [#allocation5], %s215
        %p217 = pneg %p98
        %p218 = pneg %p95
        %p219 = pneg %p126
        %p220 = pneg %p123
        %s221 = sand.u32 %s113, 1
        %s222 = scalar_lea.sflag [#allocation4], %s221
        %s223 = sand.u32 %s113, 1
        %s224 = smul.addr %s223, 24
        %s225 = scalar_lea.vmem [#allocation7], %s224
        %v227 = vld [vmem:[#allocation2] sm:$0xf]
        %v228 = vld [vmem:[%s202] sm:$0xff]
        %v229 = vld [vmem:[%s202 + $0x8] sm:$0xf]
        %v230 = vld [vmem:[%s202 + $0x10] sm:$0xff]
        %v231 = vld [vmem:[%s202 + $0x18] sm:$0xf]
        %s232 = scalar_lea.vmem [#allocation2], 4
        %v233 = vld [vmem:[%s232] sm:$0xf]
        %v234 = vld [vmem:[%s202] sm:$0xff]
        %v235 = vld [vmem:[%s202 + $0x8] sm:$0xff]
        %v236 = vld [vmem:[%s202 + $0x10] sm:$0xff]
        %v237 = vld [vmem:[%s202 + $0x18] sm:$0xff]
        %v242 = vunpack.c.l.b16 %v234
        %v243 = vunpack.c.h.b16 %v234
        %v244 = vunpack.c.l.b16 %v235
        %v245 = vunpack.c.h.b16 %v235
        %v246 = vunpack.c.l.b16 %v236
        %v247 = vunpack.c.h.b16 %v236
        %v248 = vunpack.c.l.b16 %v237
        %v249 = vunpack.c.h.b16 %v237
        %v250 = vpack.c.b16 %v246, %v242
        %v251 = vpack.c.b16 %v247, %v243
        %v252 = vpack.c.b16 %v248, %v244
        %v253 = vpack.c.b16 %v249, %v245
        %254 = vrot.lane.b32.xlu0 %v250, 127
        %v255 = vpop.permute.xlu0 %254
        %256 = vrot.lane.b32.xlu0 %v251, 127
        %v257 = vpop.permute.xlu0 %256
        %258 = vrot.lane.b32.xlu0 %v252, 127
        %v259 = vpop.permute.xlu0 %258
        %260 = vrot.lane.b32.xlu0 %v253, 127
        %v261 = vpop.permute.xlu0 %260
        %vm262 = vcmask 1039360
        %v263 = vsel %vm262, %v255, %v257
        %v264 = vsel %vm262, %v257, %v259
        %v265 = vsel %vm262, %v259, %v261
        %vm269 = vcmask 130048
        %v271 = vsel %vm269, %v233, 0
        %273 = vmatpush.bf16.msra.mxu0 0
        %274 = vmatpush.bf16.msra.mxu0 0
        %275 = vmatpush.bf16.msra.mxu0 0
        %276 = vmatpush.bf16.msra.mxu0 0
        %277 = vmatpush.bf16.msra.mxu0 0
        %278 = vmatpush.bf16.msra.mxu0 0
        %279 = vmatpush.bf16.msra.mxu0 0
        %280 = vmatpush.bf16.msra.mxu0 %v263
        %281 = vmatmul.bf16.gmra.mxu0 %v271
        %v282 = vpop.f32.mrf.mxu0
        %v283 = vadd.f32 0.0, %v282
        %v284 = vpop.f32.mrf.mxu0
        %285 = vdwg.mxu0
        %286 = vmatpush.bf16.msra.mxu0 0
        %287 = vmatpush.bf16.msra.mxu0 0
        %288 = vmatpush.bf16.msra.mxu0 0
        %289 = vmatpush.bf16.msra.mxu0 0
        %290 = vmatpush.bf16.msra.mxu0 0
        %291 = vmatpush.bf16.msra.mxu0 0
        %292 = vmatpush.bf16.msra.mxu0 0
        %293 = vmatpush.bf16.msra.mxu0 %v264
        %294 = vmatmul.bf16.gmra.mxu0 %v271
        %v295 = vpop.f32.mrf.mxu0
        %v296 = vadd.f32 0.0, %v295
        %v297 = vpop.f32.mrf.mxu0
        %298 = vdwg.mxu0
        %299 = vmatpush.bf16.msra.mxu0 0
        %300 = vmatpush.bf16.msra.mxu0 0
        %301 = vmatpush.bf16.msra.mxu0 0
        %302 = vmatpush.bf16.msra.mxu0 0
        %303 = vmatpush.bf16.msra.mxu0 0
        %304 = vmatpush.bf16.msra.mxu0 0
        %305 = vmatpush.bf16.msra.mxu0 0
        %306 = vmatpush.bf16.msra.mxu0 %v265
        %307 = vmatmul.bf16.gmra.mxu0 %v271
        %v308 = vpop.f32.mrf.mxu0
        %v309 = vadd.f32 0.0, %v308
        %v310 = vpop.f32.mrf.mxu0
        %311 = vdwg.mxu0
        %v316 = vunpack.c.l.b16 %v228
        %v317 = vunpack.c.h.b16 %v228
        %v318 = vunpack.c.l.b16 %v229
        %v319 = vunpack.c.l.b16 %v230
        %v320 = vunpack.c.h.b16 %v230
        %v321 = vunpack.c.l.b16 %v231
        %v322 = vpack.c.b16 %v319, %v316
        %v323 = vpack.c.b16 %v320, %v317
        %v324 = vpack.c.b16 %v321, %v318
        %v329 = vsel %vm269, %v227, 0
        %331 = vmatpush.bf16.msra.mxu0 0
        %332 = vmatpush.bf16.msra.mxu0 0
        %333 = vmatpush.bf16.msra.mxu0 0
        %334 = vmatpush.bf16.msra.mxu0 0
        %335 = vmatpush.bf16.msra.mxu0 0
        %336 = vmatpush.bf16.msra.mxu0 0
        %337 = vmatpush.bf16.msra.mxu0 0
        %338 = vmatpush.bf16.msra.mxu0 %v322
        %339 = vmatmul.bf16.gmra.mxu0 %v329
        %v340 = vpop.f32.mrf.mxu0
        %v341 = vadd.f32 %v283, %v340
        %v342 = vpop.f32.mrf.mxu0
        %343 = vdwg.mxu0
        %344 = vmatpush.bf16.msra.mxu0 0
        %345 = vmatpush.bf16.msra.mxu0 0
        %346 = vmatpush.bf16.msra.mxu0 0
        %347 = vmatpush.bf16.msra.mxu0 0
        %348 = vmatpush.bf16.msra.mxu0 0
        %349 = vmatpush.bf16.msra.mxu0 0
        %350 = vmatpush.bf16.msra.mxu0 0
        %351 = vmatpush.bf16.msra.mxu0 %v323
        %352 = vmatmul.bf16.gmra.mxu0 %v329
        %v353 = vpop.f32.mrf.mxu0
        %v354 = vadd.f32 %v296, %v353
        %v355 = vpop.f32.mrf.mxu0
        %356 = vdwg.mxu0
        %357 = vmatpush.bf16.msra.mxu0 0
        %358 = vmatpush.bf16.msra.mxu0 0
        %359 = vmatpush.bf16.msra.mxu0 0
        %360 = vmatpush.bf16.msra.mxu0 0
        %361 = vmatpush.bf16.msra.mxu0 0
        %362 = vmatpush.bf16.msra.mxu0 0
        %363 = vmatpush.bf16.msra.mxu0 0
        %364 = vmatpush.bf16.msra.mxu0 %v324
        %365 = vmatmul.bf16.gmra.mxu0 %v329
        %v366 = vpop.f32.mrf.mxu0
        %v367 = vadd.f32 %v309, %v366
        %v368 = vpop.f32.mrf.mxu0
        %369 = vdwg.mxu0
        %s370 = scalar_lea.vmem [#allocation2], 8
        %v371 = vld [vmem:[%s370] sm:$0xf]
        %372 = vrot.lane.b32.xlu0 %v250, 126
        %v373 = vpop.permute.xlu0 %372
        %374 = vrot.lane.b32.xlu0 %v251, 126
        %v375 = vpop.permute.xlu0 %374
        %376 = vrot.lane.b32.xlu0 %v252, 126
        %v377 = vpop.permute.xlu0 %376
        %378 = vrot.lane.b32.xlu0 %v253, 126
        %v379 = vpop.permute.xlu0 %378
        %vm380 = vcmask 1031168
        %v381 = vsel %vm380, %v373, %v375
        %v382 = vsel %vm380, %v375, %v377
        %v383 = vsel %vm380, %v377, %v379
        %v388 = vsel %vm269, %v371, 0
        %390 = vmatpush.bf16.msra.mxu0 0
        %391 = vmatpush.bf16.msra.mxu0 0
        %392 = vmatpush.bf16.msra.mxu0 0
        %393 = vmatpush.bf16.msra.mxu0 0
        %394 = vmatpush.bf16.msra.mxu0 0
        %395 = vmatpush.bf16.msra.mxu0 0
        %396 = vmatpush.bf16.msra.mxu0 0
        %397 = vmatpush.bf16.msra.mxu0 %v381
        %398 = vmatmul.bf16.gmra.mxu0 %v388
        %v399 = vpop.f32.mrf.mxu0
        %v400 = vadd.f32 0.0, %v399
        %v401 = vpop.f32.mrf.mxu0
        %402 = vdwg.mxu0
        %403 = vmatpush.bf16.msra.mxu0 0
        %404 = vmatpush.bf16.msra.mxu0 0
        %405 = vmatpush.bf16.msra.mxu0 0
        %406 = vmatpush.bf16.msra.mxu0 0
        %407 = vmatpush.bf16.msra.mxu0 0
        %408 = vmatpush.bf16.msra.mxu0 0
        %409 = vmatpush.bf16.msra.mxu0 0
        %410 = vmatpush.bf16.msra.mxu0 %v382
        %411 = vmatmul.bf16.gmra.mxu0 %v388
        %v412 = vpop.f32.mrf.mxu0
        %v413 = vadd.f32 0.0, %v412
        %v414 = vpop.f32.mrf.mxu0
        %415 = vdwg.mxu0
        %416 = vmatpush.bf16.msra.mxu0 0
        %417 = vmatpush.bf16.msra.mxu0 0
        %418 = vmatpush.bf16.msra.mxu0 0
        %419 = vmatpush.bf16.msra.mxu0 0
        %420 = vmatpush.bf16.msra.mxu0 0
        %421 = vmatpush.bf16.msra.mxu0 0
        %422 = vmatpush.bf16.msra.mxu0 0
        %423 = vmatpush.bf16.msra.mxu0 %v383
        %424 = vmatmul.bf16.gmra.mxu0 %v388
        %v425 = vpop.f32.mrf.mxu0
        %v426 = vadd.f32 0.0, %v425
        %v427 = vpop.f32.mrf.mxu0
        %428 = vdwg.mxu0
        %v429 = vadd.f32 %v341, %v400
        %v430 = vadd.f32 %v354, %v413
        %v431 = vadd.f32 %v367, %v426
        %s432 = scalar_lea.vmem [#allocation2], 12
        %v433 = vld [vmem:[%s432] sm:$0xf]
        %434 = vrot.lane.b32.xlu0 %v250, 110
        %v435 = vpop.permute.xlu0 %434
        %436 = vrot.lane.b32.xlu0 %v251, 110
        %v437 = vpop.permute.xlu0 %436
        %438 = vrot.lane.b32.xlu0 %v252, 110
        %v439 = vpop.permute.xlu0 %438
        %440 = vrot.lane.b32.xlu0 %v253, 110
        %v441 = vpop.permute.xlu0 %440
        %vm442 = vcmask 900096
        %v443 = vsel %vm442, %v435, %v437
        %v444 = vsel %vm442, %v437, %v439
        %v445 = vsel %vm442, %v439, %v441
        %v450 = vsel %vm269, %v433, 0
        %452 = vmatpush.bf16.msra.mxu0 0
        %453 = vmatpush.bf16.msra.mxu0 0
        %454 = vmatpush.bf16.msra.mxu0 0
        %455 = vmatpush.bf16.msra.mxu0 0
        %456 = vmatpush.bf16.msra.mxu0 0
        %457 = vmatpush.bf16.msra.mxu0 0
        %458 = vmatpush.bf16.msra.mxu0 0
        %459 = vmatpush.bf16.msra.mxu0 %v443
        %460 = vmatmul.bf16.gmra.mxu0 %v450
        %v461 = vpop.f32.mrf.mxu0
        %v462 = vadd.f32 0.0, %v461
        %v463 = vpop.f32.mrf.mxu0
        %464 = vdwg.mxu0
        %465 = vmatpush.bf16.msra.mxu0 0
        %466 = vmatpush.bf16.msra.mxu0 0
        %467 = vmatpush.bf16.msra.mxu0 0
        %468 = vmatpush.bf16.msra.mxu0 0
        %469 = vmatpush.bf16.msra.mxu0 0
        %470 = vmatpush.bf16.msra.mxu0 0
        %471 = vmatpush.bf16.msra.mxu0 0
        %472 = vmatpush.bf16.msra.mxu0 %v444
        %473 = vmatmul.bf16.gmra.mxu0 %v450
        %v474 = vpop.f32.mrf.mxu0
        %v475 = vadd.f32 0.0, %v474
        %v476 = vpop.f32.mrf.mxu0
        %477 = vdwg.mxu0
        %478 = vmatpush.bf16.msra.mxu0 0
        %479 = vmatpush.bf16.msra.mxu0 0
        %480 = vmatpush.bf16.msra.mxu0 0
        %481 = vmatpush.bf16.msra.mxu0 0
        %482 = vmatpush.bf16.msra.mxu0 0
        %483 = vmatpush.bf16.msra.mxu0 0
        %484 = vmatpush.bf16.msra.mxu0 0
        %485 = vmatpush.bf16.msra.mxu0 %v445
        %486 = vmatmul.bf16.gmra.mxu0 %v450
        %v487 = vpop.f32.mrf.mxu0
        %v488 = vadd.f32 0.0, %v487
        %v489 = vpop.f32.mrf.mxu0
        %490 = vdwg.mxu0
        %v491 = vadd.f32 %v429, %v462
        %v492 = vadd.f32 %v430, %v475
        %v493 = vadd.f32 %v431, %v488
        %s494 = scalar_lea.vmem [#allocation2], 16
        %v495 = vld [vmem:[%s494] sm:$0xf]
        %496 = vrot.lane.b32.xlu0 %v250, 109
        %v497 = vpop.permute.xlu0 %496
        %498 = vrot.lane.b32.xlu0 %v251, 109
        %v499 = vpop.permute.xlu0 %498
        %500 = vrot.lane.b32.xlu0 %v252, 109
        %v501 = vpop.permute.xlu0 %500
        %502 = vrot.lane.b32.xlu0 %v253, 109
        %v503 = vpop.permute.xlu0 %502
        %vm504 = vcmask 891904
        %v505 = vsel %vm504, %v497, %v499
        %v506 = vsel %vm504, %v499, %v501
        %v507 = vsel %vm504, %v501, %v503
        %v512 = vsel %vm269, %v495, 0
        %514 = vmatpush.bf16.msra.mxu0 0
        %515 = vmatpush.bf16.msra.mxu0 0
        %516 = vmatpush.bf16.msra.mxu0 0
        %517 = vmatpush.bf16.msra.mxu0 0
        %518 = vmatpush.bf16.msra.mxu0 0
        %519 = vmatpush.bf16.msra.mxu0 0
        %520 = vmatpush.bf16.msra.mxu0 0
        %521 = vmatpush.bf16.msra.mxu0 %v505
        %522 = vmatmul.bf16.gmra.mxu0 %v512
        %v523 = vpop.f32.mrf.mxu0
        %v524 = vadd.f32 0.0, %v523
        %v525 = vpop.f32.mrf.mxu0
        %526 = vdwg.mxu0
        %527 = vmatpush.bf16.msra.mxu0 0
        %528 = vmatpush.bf16.msra.mxu0 0
        %529 = vmatpush.bf16.msra.mxu0 0
        %530 = vmatpush.bf16.msra.mxu0 0
        %531 = vmatpush.bf16.msra.mxu0 0
        %532 = vmatpush.bf16.msra.mxu0 0
        %533 = vmatpush.bf16.msra.mxu0 0
        %534 = vmatpush.bf16.msra.mxu0 %v506
        %535 = vmatmul.bf16.gmra.mxu0 %v512
        %v536 = vpop.f32.mrf.mxu0
        %v537 = vadd.f32 0.0, %v536
        %v538 = vpop.f32.mrf.mxu0
        %539 = vdwg.mxu0
        %540 = vmatpush.bf16.msra.mxu0 0
        %541 = vmatpush.bf16.msra.mxu0 0
        %542 = vmatpush.bf16.msra.mxu0 0
        %543 = vmatpush.bf16.msra.mxu0 0
        %544 = vmatpush.bf16.msra.mxu0 0
        %545 = vmatpush.bf16.msra.mxu0 0
        %546 = vmatpush.bf16.msra.mxu0 0
        %547 = vmatpush.bf16.msra.mxu0 %v507
        %548 = vmatmul.bf16.gmra.mxu0 %v512
        %v549 = vpop.f32.mrf.mxu0
        %v550 = vadd.f32 0.0, %v549
        %v551 = vpop.f32.mrf.mxu0
        %552 = vdwg.mxu0
        %v553 = vadd.f32 %v491, %v524
        %v554 = vadd.f32 %v492, %v537
        %v555 = vadd.f32 %v493, %v550
        %s556 = scalar_lea.vmem [#allocation2], 20
        %v557 = vld [vmem:[%s556] sm:$0xf]
        %558 = vrot.lane.b32.xlu0 %v250, 108
        %v559 = vpop.permute.xlu0 %558
        %560 = vrot.lane.b32.xlu0 %v251, 108
        %v561 = vpop.permute.xlu0 %560
        %562 = vrot.lane.b32.xlu0 %v252, 108
        %v563 = vpop.permute.xlu0 %562
        %564 = vrot.lane.b32.xlu0 %v253, 108
        %v565 = vpop.permute.xlu0 %564
        %vm566 = vcmask 883712
        %v567 = vsel %vm566, %v559, %v561
        %v568 = vsel %vm566, %v561, %v563
        %v569 = vsel %vm566, %v563, %v565
        %v574 = vsel %vm269, %v557, 0
        %576 = vmatpush.bf16.msra.mxu0 0
        %577 = vmatpush.bf16.msra.mxu0 0
        %578 = vmatpush.bf16.msra.mxu0 0
        %579 = vmatpush.bf16.msra.mxu0 0
        %580 = vmatpush.bf16.msra.mxu0 0
        %581 = vmatpush.bf16.msra.mxu0 0
        %582 = vmatpush.bf16.msra.mxu0 0
        %583 = vmatpush.bf16.msra.mxu0 %v567
        %584 = vmatmul.bf16.gmra.mxu0 %v574
        %v585 = vpop.f32.mrf.mxu0
        %v586 = vadd.f32 0.0, %v585
        %v587 = vpop.f32.mrf.mxu0
        %588 = vdwg.mxu0
        %589 = vmatpush.bf16.msra.mxu0 0
        %590 = vmatpush.bf16.msra.mxu0 0
        %591 = vmatpush.bf16.msra.mxu0 0
        %592 = vmatpush.bf16.msra.mxu0 0
        %593 = vmatpush.bf16.msra.mxu0 0
        %594 = vmatpush.bf16.msra.mxu0 0
        %595 = vmatpush.bf16.msra.mxu0 0
        %596 = vmatpush.bf16.msra.mxu0 %v568
        %597 = vmatmul.bf16.gmra.mxu0 %v574
        %v598 = vpop.f32.mrf.mxu0
        %v599 = vadd.f32 0.0, %v598
        %v600 = vpop.f32.mrf.mxu0
        %601 = vdwg.mxu0
        %602 = vmatpush.bf16.msra.mxu0 0
        %603 = vmatpush.bf16.msra.mxu0 0
        %604 = vmatpush.bf16.msra.mxu0 0
        %605 = vmatpush.bf16.msra.mxu0 0
        %606 = vmatpush.bf16.msra.mxu0 0
        %607 = vmatpush.bf16.msra.mxu0 0
        %608 = vmatpush.bf16.msra.mxu0 0
        %609 = vmatpush.bf16.msra.mxu0 %v569
        %610 = vmatmul.bf16.gmra.mxu0 %v574
        %v611 = vpop.f32.mrf.mxu0
        %v612 = vadd.f32 0.0, %v611
        %v613 = vpop.f32.mrf.mxu0
        %614 = vdwg.mxu0
        %v615 = vadd.f32 %v553, %v586
        %v616 = vadd.f32 %v554, %v599
        %v617 = vadd.f32 %v555, %v612
        %s618 = scalar_lea.vmem [#allocation2], 24
        %v619 = vld [vmem:[%s618] sm:$0xf]
        %620 = vrot.lane.b32.xlu0 %v250, 92
        %v621 = vpop.permute.xlu0 %620
        %622 = vrot.lane.b32.xlu0 %v251, 92
        %v623 = vpop.permute.xlu0 %622
        %624 = vrot.lane.b32.xlu0 %v252, 92
        %v625 = vpop.permute.xlu0 %624
        %626 = vrot.lane.b32.xlu0 %v253, 92
        %v627 = vpop.permute.xlu0 %626
        %vm628 = vcmask 752640
        %v629 = vsel %vm628, %v621, %v623
        %v630 = vsel %vm628, %v623, %v625
        %v631 = vsel %vm628, %v625, %v627
        %v636 = vsel %vm269, %v619, 0
        %638 = vmatpush.bf16.msra.mxu0 0
        %639 = vmatpush.bf16.msra.mxu0 0
        %640 = vmatpush.bf16.msra.mxu0 0
        %641 = vmatpush.bf16.msra.mxu0 0
        %642 = vmatpush.bf16.msra.mxu0 0
        %643 = vmatpush.bf16.msra.mxu0 0
        %644 = vmatpush.bf16.msra.mxu0 0
        %645 = vmatpush.bf16.msra.mxu0 %v629
        %646 = vmatmul.bf16.gmra.mxu0 %v636
        %v647 = vpop.f32.mrf.mxu0
        %v648 = vadd.f32 0.0, %v647
        %v649 = vpop.f32.mrf.mxu0
        %650 = vdwg.mxu0
        %651 = vmatpush.bf16.msra.mxu0 0
        %652 = vmatpush.bf16.msra.mxu0 0
        %653 = vmatpush.bf16.msra.mxu0 0
        %654 = vmatpush.bf16.msra.mxu0 0
        %655 = vmatpush.bf16.msra.mxu0 0
        %656 = vmatpush.bf16.msra.mxu0 0
        %657 = vmatpush.bf16.msra.mxu0 0
        %658 = vmatpush.bf16.msra.mxu0 %v630
        %659 = vmatmul.bf16.gmra.mxu0 %v636
        %v660 = vpop.f32.mrf.mxu0
        %v661 = vadd.f32 0.0, %v660
        %v662 = vpop.f32.mrf.mxu0
        %663 = vdwg.mxu0
        %664 = vmatpush.bf16.msra.mxu0 0
        %665 = vmatpush.bf16.msra.mxu0 0
        %666 = vmatpush.bf16.msra.mxu0 0
        %667 = vmatpush.bf16.msra.mxu0 0
        %668 = vmatpush.bf16.msra.mxu0 0
        %669 = vmatpush.bf16.msra.mxu0 0
        %670 = vmatpush.bf16.msra.mxu0 0
        %671 = vmatpush.bf16.msra.mxu0 %v631
        %672 = vmatmul.bf16.gmra.mxu0 %v636
        %v673 = vpop.f32.mrf.mxu0
        %v674 = vadd.f32 0.0, %v673
        %v675 = vpop.f32.mrf.mxu0
        %676 = vdwg.mxu0
        %v677 = vadd.f32 %v615, %v648
        %v678 = vadd.f32 %v616, %v661
        %v679 = vadd.f32 %v617, %v674
        %s680 = scalar_lea.vmem [#allocation2], 28
        %v681 = vld [vmem:[%s680] sm:$0xf]
        %682 = vrot.lane.b32.xlu0 %v250, 91
        %v683 = vpop.permute.xlu0 %682
        %684 = vrot.lane.b32.xlu0 %v251, 91
        %v685 = vpop.permute.xlu0 %684
        %686 = vrot.lane.b32.xlu0 %v252, 91
        %v687 = vpop.permute.xlu0 %686
        %688 = vrot.lane.b32.xlu0 %v253, 91
        %v689 = vpop.permute.xlu0 %688
        %vm690 = vcmask 744448
        %v691 = vsel %vm690, %v683, %v685
        %v692 = vsel %vm690, %v685, %v687
        %v693 = vsel %vm690, %v687, %v689
        %v698 = vsel %vm269, %v681, 0
        %700 = vmatpush.bf16.msra.mxu0 0
        %701 = vmatpush.bf16.msra.mxu0 0
        %702 = vmatpush.bf16.msra.mxu0 0
        %703 = vmatpush.bf16.msra.mxu0 0
        %704 = vmatpush.bf16.msra.mxu0 0
        %705 = vmatpush.bf16.msra.mxu0 0
        %706 = vmatpush.bf16.msra.mxu0 0
        %707 = vmatpush.bf16.msra.mxu0 %v691
        %708 = vmatmul.bf16.gmra.mxu0 %v698
        %v709 = vpop.f32.mrf.mxu0
        %v710 = vadd.f32 0.0, %v709
        %v711 = vpop.f32.mrf.mxu0
        %712 = vdwg.mxu0
        %713 = vmatpush.bf16.msra.mxu0 0
        %714 = vmatpush.bf16.msra.mxu0 0
        %715 = vmatpush.bf16.msra.mxu0 0
        %716 = vmatpush.bf16.msra.mxu0 0
        %717 = vmatpush.bf16.msra.mxu0 0
        %718 = vmatpush.bf16.msra.mxu0 0
        %719 = vmatpush.bf16.msra.mxu0 0
        %720 = vmatpush.bf16.msra.mxu0 %v692
        %721 = vmatmul.bf16.gmra.mxu0 %v698
        %v722 = vpop.f32.mrf.mxu0
        %v723 = vadd.f32 0.0, %v722
        %v724 = vpop.f32.mrf.mxu0
        %725 = vdwg.mxu0
        %726 = vmatpush.bf16.msra.mxu0 0
        %727 = vmatpush.bf16.msra.mxu0 0
        %728 = vmatpush.bf16.msra.mxu0 0
        %729 = vmatpush.bf16.msra.mxu0 0
        %730 = vmatpush.bf16.msra.mxu0 0
        %731 = vmatpush.bf16.msra.mxu0 0
        %732 = vmatpush.bf16.msra.mxu0 0
        %733 = vmatpush.bf16.msra.mxu0 %v693
        %734 = vmatmul.bf16.gmra.mxu0 %v698
        %v735 = vpop.f32.mrf.mxu0
        %v736 = vadd.f32 0.0, %v735
        %v737 = vpop.f32.mrf.mxu0
        %738 = vdwg.mxu0
        %v739 = vadd.f32 %v677, %v710
        %v740 = vadd.f32 %v678, %v723
        %v741 = vadd.f32 %v679, %v736
        %s742 = scalar_lea.vmem [#allocation2], 32
        %v743 = vld [vmem:[%s742] sm:$0xf]
        %744 = vrot.lane.b32.xlu0 %v250, 90
        %v745 = vpop.permute.xlu0 %744
        %746 = vrot.lane.b32.xlu0 %v251, 90
        %v747 = vpop.permute.xlu0 %746
        %748 = vrot.lane.b32.xlu0 %v252, 90
        %v749 = vpop.permute.xlu0 %748
        %750 = vrot.lane.b32.xlu0 %v253, 90
        %v751 = vpop.permute.xlu0 %750
        %vm752 = vcmask 736256
        %v753 = vsel %vm752, %v745, %v747
        %v754 = vsel %vm752, %v747, %v749
        %v755 = vsel %vm752, %v749, %v751
        %v760 = vsel %vm269, %v743, 0
        %762 = vmatpush.bf16.msra.mxu0 0
        %763 = vmatpush.bf16.msra.mxu0 0
        %764 = vmatpush.bf16.msra.mxu0 0
        %765 = vmatpush.bf16.msra.mxu0 0
        %766 = vmatpush.bf16.msra.mxu0 0
        %767 = vmatpush.bf16.msra.mxu0 0
        %768 = vmatpush.bf16.msra.mxu0 0
        %769 = vmatpush.bf16.msra.mxu0 %v753
        %770 = vmatmul.bf16.gmra.mxu0 %v760
        %v771 = vpop.f32.mrf.mxu0
        %v772 = vadd.f32 0.0, %v771
        %v773 = vpop.f32.mrf.mxu0
        %774 = vdwg.mxu0
        %775 = vmatpush.bf16.msra.mxu0 0
        %776 = vmatpush.bf16.msra.mxu0 0
        %777 = vmatpush.bf16.msra.mxu0 0
        %778 = vmatpush.bf16.msra.mxu0 0
        %779 = vmatpush.bf16.msra.mxu0 0
        %780 = vmatpush.bf16.msra.mxu0 0
        %781 = vmatpush.bf16.msra.mxu0 0
        %782 = vmatpush.bf16.msra.mxu0 %v754
        %783 = vmatmul.bf16.gmra.mxu0 %v760
        %v784 = vpop.f32.mrf.mxu0
        %v785 = vadd.f32 0.0, %v784
        %v786 = vpop.f32.mrf.mxu0
        %787 = vdwg.mxu0
        %788 = vmatpush.bf16.msra.mxu0 0
        %789 = vmatpush.bf16.msra.mxu0 0
        %790 = vmatpush.bf16.msra.mxu0 0
        %791 = vmatpush.bf16.msra.mxu0 0
        %792 = vmatpush.bf16.msra.mxu0 0
        %793 = vmatpush.bf16.msra.mxu0 0
        %794 = vmatpush.bf16.msra.mxu0 0
        %795 = vmatpush.bf16.msra.mxu0 %v755
        %796 = vmatmul.bf16.gmra.mxu0 %v760
        %v797 = vpop.f32.mrf.mxu0
        %v798 = vadd.f32 0.0, %v797
        %v799 = vpop.f32.mrf.mxu0
        %800 = vdwg.mxu0
        %v801 = vadd.f32 %v739, %v772
        %v802 = vadd.f32 %v740, %v785
        %v803 = vadd.f32 %v741, %v798
        %v804 = vld [vmem:[%s1] sm:$0xff]
        %806 = vset.pattern.permute.xlu0 0
        %807 = vperm.xlu0 %806, %v804
        %v808 = vpop.permute.xlu0 %807
        %v810 = vadd.f32 %v801, %v808
        %v811 = vadd.f32 %v802, %v808
        %v812 = vadd.f32 %v803, %v808
        %v813 = vmax.f32 %v810, 0.0
        %v814 = vmax.f32 %v811, 0.0
        %v815 = vmax.f32 %v812, 0.0
        %816 = vst [vmem:[%s225] sm:$0xff] %v813
        %817 = vst [vmem:[%s225 + $0x8] sm:$0xff] %v814
        %818 = vst [vmem:[%s225 + $0x10] sm:$0xff] %v815
        %s819 = sand.u32 %s113, 1
        %s820 = scalar_lea.sflag [#allocation4], %s819
        %s821 = sand.u32 %s113, 1
        %s822 = smul.addr %s821, 24
        %s823 = scalar_lea.vmem [#allocation7], %s822
        // Predicated region
        $region41: #{tpu_custom_call.1} parent=31 // pred_check
          %p824 = pneg %p123
        $region42: #{tpu_custom_call.1} parent=31 // pred_check_branch
          %826 = sbr.rel (%p824) target = $region44
        $region43: #{tpu_custom_call.1} parent=31 // pred_region
          %828 = vsyncadd %s820, 0
          %s829 = smul.addr %s26, 3
          %s830 = smul.addr %s25, 3
          %s831 = sadd.s32 %s829, %s830
          %s832 = smul.addr %s831, 8
          %s833 = scalar_lea.hbm %s3, %s832
          %s835 = sshll.u32 %s823, 4
          %s836 = int_to_ptr.vmem [resolvable:$true] %s835
          %s837 = sshll.u32 %s833, 4
          %s838 = int_to_ptr.hbm [resolvable:$true] %s837
          %840 = dma.vmem_to_hbm [thread:$0]  %s836, 384, %s838, %s820
        $region44: #{tpu_custom_call.1} parent=31 // pred_fallthru
          _
      $region32: #{tpu_custom_call.1} parent=5 // pred_fallthru
        _
      %p841 = scmp.le.s32.totalorder 2, %s16
      // Predicated region
      $region45: #{tpu_custom_call.1} parent=5 // pred_check
        %p842 = pneg %p841
      $region46: #{tpu_custom_call.1} parent=5 // pred_check_branch
        %844 = sbr.rel (%p842) target = $region48
      $region47: #{tpu_custom_call.1} parent=5 // pred_region
        %s845 = ssub.s32 %s16, 2
        // Predicated region
        $region49: #{tpu_custom_call.1} parent=47 // pred_check
          %p846 = pneg %p129
        $region50: #{tpu_custom_call.1} parent=47 // pred_check_branch
          %848 = sbr.rel (%p846) target = $region52
        $region51: #{tpu_custom_call.1} parent=47 // pred_region
          %s849 = sand.u32 %s114, 1
          %s850 = scalar_lea.sflag [#allocation4], %s849
          %s851 = sand.u32 %s114, 1
          %s852 = smul.addr %s851, 24
          %s853 = scalar_lea.vmem [#allocation7], %s852
          %855 = dma.done %s850, 384
        $region52: #{tpu_custom_call.1} parent=47 // pred_fallthru
          _
      $region48: #{tpu_custom_call.1} parent=5 // pred_fallthru
        _
    $region6: #{tpu_custom_call.1} parent=1 // loop_footer
      %s20 = sadd.s32 1, %s16
    $region7: #{tpu_custom_call.1} parent=1 // loop_footer_branch
      %15 = sbr.rel target = $region3
    $region8: #{tpu_custom_call.1} parent=1 // loop_exit
      _
    %856 = vsyncpa [#allocation3], 1
    %s857 = scalar_lea.sflag [#allocation3], 1
    %858 = vsyncpa %s857, 1
    %859 = vsyncpa [#allocation6], 1
    %s860 = scalar_lea.sflag [#allocation6], 1
    %861 = vsyncpa %s860, 1
    %862 = vsyncpa [#allocation4], 1
    %s863 = scalar_lea.sflag [#allocation4], 1
    %864 = vsyncpa %s863, 1

// kernel: tpu_custom_call.1
$region0: #{tpu_custom_call.1}
  #allocation0 [shape = 'u32[]', space=smem, size = 0x4, offset = 0x4, fixed_abs, tag = 'smem constant byte address 0x4 - core index']
  #allocation1 [shape = 'u32[72,128]{1,0:T(1,128)}', space=vmem, size = 0x9000, scoped, tag = 'internal scratch']
  %s0 = inlined_call_operand.hbm [shape: bf16[9,8,16], index: 0, kind: input, shape index: {}]
  %s1 = inlined_call_operand.vmem [shape: f32[8,1], index: 1, kind: input, shape index: {}]
  %s2 = inlined_call_operand.hbm [shape: bf16[2,1,16,512], index: 2, kind: input, shape index: {}]
  %s3 = inlined_call_operand.hbm [shape: f32[2,1,8,384], index: 3, kind: output, shape index: {}]
  %s4 = sld [smem:[#allocation0]]
  $region53: #{tpu_custom_call.1} parent=0
    _
  %s6 = ssub.s32 1, %s4
  %s7 = scalar_select 0, %s6, %s4
  $region1: #{tpu_custom_call.1} parent=0
    #allocation2 [shape = 'u8[18432]{0}', space=vmem, size = 0x4800, scoped, tag = 'input window, operand 0, single buffered']
    #allocation3 [shape = 's32[2]{0}', space=sflag, size = 0x8, scoped, tag = 'scoped memory for tpu_custom_call.1']
    #allocation4 [shape = 's32[2]{0}', space=sflag, size = 0x8, scoped, tag = 'scoped memory for tpu_custom_call.1']
    #allocation5 [shape = 'u8[32768]{0}', space=vmem, size = 0x8000, scoped, tag = 'input window, operand 2']
    #allocation6 [shape = 's32[2]{0}', space=sflag, size = 0x8, scoped, tag = 'scoped memory for tpu_custom_call.1']
    #allocation7 [shape = 'u8[24576]{0}', space=vmem, size = 0x6000, scoped, tag = 'output window, operand 0']
    %8 = vsyncpa [#allocation3], 0
    %9 = vsyncpa [#allocation6], 0
    %s10 = scalar_lea.sflag [#allocation6], 1
    %11 = vsyncpa %s10, 0
    %12 = vsyncpa [#allocation4], 0
    %s13 = scalar_lea.sflag [#allocation4], 1
    %14 = vsyncpa %s13, 0
    loop: start=0, step=1, limit=4
    $region2: #{tpu_custom_call.1} parent=1 // loop_pre_header
      _
    $region3: #{tpu_custom_call.1} parent=1 // loop_header
      %s16 = sphi 0, %s20
      %p17 = scmp.ge.s32.totalorder %s16, 4
      %s23 = sphi 0, %s35
      %s24 = sphi 0, %s31
      %s25 = sphi 0, %s23
      %s26 = sphi 0, %s24
      %s27 = sphi 0, %s25
      %s28 = sphi 0, %s26
      %s36 = sphi 0, %s36
      %s38 = sphi 0, %s36
      %s39 = sphi 0, %s38
      %s53 = sphi 0, %s39
      %s57 = sphi 0, %s57
      %s59 = sphi 0, %s57
      %s60 = sphi 0, %s59
      %s74 = sphi 0, %s60
      %s82 = sphi 0, %s84
      %s85 = sphi 0, %s82
      %s86 = sphi 0, %s85
      %s102 = sphi 0, %s86
      %s110 = sphi 0, %s112
      %s113 = sphi 0, %s110
      %s114 = sphi 0, %s113
      %s130 = sphi 0, %s114
    $region4: #{tpu_custom_call.1} parent=1 // loop_header_branch
      %19 = sbr.rel (%p17) target = $region8
    $region5: #{tpu_custom_call.1} parent=1 // loop_body
      %s21 = ssub.s32 %s16, 1
      %s22 = ssub.s32 %s16, 2
      %s29 = sadd.s32 1, %s24
      %p30 = scmp.ge.s32.totalorder %s29, 1
      %s31 = scalar_select %p30, 0, %s29
      %s32 = sadd.s32 1, %s23
      %s33 = scalar_select %p30, %s32, %s23
      %p34 = scmp.ge.s32.totalorder %s33, 2
      %s35 = scalar_select %p34, 0, %s33
      %s37 = sadd.s32 %s36, 1
      %p40 = scmp.eq.s32.totalorder %s16, 1
      %p41 = scmp.ne.s32.totalorder %s36, %s38
      %p42 = scmp.eq.s32.totalorder %s16, 0
      %p43 = por %p41, %p42
      %p44 = scmp.ne.s32.totalorder %s36, %s38
      %p45 = scmp.eq.s32.totalorder %s21, 1
      %p46 = por %p44, %p45
      %p47 = scmp.ne.s32.totalorder %s38, %s39
      %p48 = scmp.eq.s32.totalorder %s21, 0
      %p49 = por %p47, %p48
      %p50 = scmp.ne.s32.totalorder %s38, %s39
      %p51 = scmp.eq.s32.totalorder %s22, 1
      %p52 = por %p50, %p51
      %p54 = scmp.ne.s32.totalorder %s39, %s53
      %p55 = scmp.eq.s32.totalorder %s22, 0
      %p56 = por %p54, %p55
      %s58 = sadd.s32 %s57, 1
      %p61 = scmp.eq.s32.totalorder %s16, 1
      %p62 = scmp.ne.s32.totalorder %s57, %s59
      %p63 = scmp.eq.s32.totalorder %s16, 0
      %p64 = por %p62, %p63
      %p65 = scmp.ne.s32.totalorder %s57, %s59
      %p66 = scmp.eq.s32.totalorder %s21, 1
      %p67 = por %p65, %p66
      %p68 = scmp.ne.s32.totalorder %s59, %s60
      %p69 = scmp.eq.s32.totalorder %s21, 0
      %p70 = por %p68, %p69
      %p71 = scmp.ne.s32.totalorder %s59, %s60
      %p72 = scmp.eq.s32.totalorder %s22, 1
      %p73 = por %p71, %p72
      %p75 = scmp.ne.s32.totalorder %s60, %s74
      %p76 = scmp.eq.s32.totalorder %s22, 0
      %p77 = por %p75, %p76
      %s78 = ssub.s32 %s23, %s35
      %s79 = ssub.s32 %s24, %s31
      %s80 = sor.u32 %s78, %s79
      %p81 = scmp.eq.s32.totalorder %s80, 0
      %s83 = sadd.s32 %s82, 1
      %s84 = scalar_select %p81, %s82, %s83
      %p87 = pneg %p81
      %p88 = scmp.eq.s32.totalorder %s16, 1
      %p89 = por %p87, %p88
      %p90 = scmp.ne.s32.totalorder %s82, %s85
      %p91 = scmp.eq.s32.totalorder %s16, 0
      %p92 = por %p90, %p91
      %p93 = scmp.ne.s32.totalorder %s82, %s85
      %p94 = scmp.eq.s32.totalorder %s21, 1
      %p95 = por %p93, %p94
      %p96 = scmp.ne.s32.totalorder %s85, %s86
      %p97 = scmp.eq.s32.totalorder %s21, 0
      %p98 = por %p96, %p97
      %p99 = scmp.ne.s32.totalorder %s85, %s86
      %p100 = scmp.eq.s32.totalorder %s22, 1
      %p101 = por %p99, %p100
      %p103 = scmp.ne.s32.totalorder %s86, %s102
      %p104 = scmp.eq.s32.totalorder %s22, 0
      %p105 = por %p103, %p104
      %s106 = ssub.s32 %s23, %s35
      %s107 = ssub.s32 %s24, %s31
      %s108 = sor.u32 %s106, %s107
      %p109 = scmp.eq.s32.totalorder %s108, 0
      %s111 = sadd.s32 %s110, 1
      %s112 = scalar_select %p109, %s110, %s111
      %p115 = pneg %p109
      %p116 = scmp.eq.s32.totalorder %s16, 1
      %p117 = por %p115, %p116
      %p118 = scmp.ne.s32.totalorder %s110, %s113
      %p119 = scmp.eq.s32.totalorder %s16, 0
      %p120 = por %p118, %p119
      %p121 = scmp.ne.s32.totalorder %s110, %s113
      %p122 = scmp.eq.s32.totalorder %s21, 1
      %p123 = por %p121, %p122
      %p124 = scmp.ne.s32.totalorder %s113, %s114
      %p125 = scmp.eq.s32.totalorder %s21, 0
      %p126 = por %p124, %p125
      %p127 = scmp.ne.s32.totalorder %s113, %s114
      %p128 = scmp.eq.s32.totalorder %s22, 1
      %p129 = por %p127, %p128
      %p131 = scmp.ne.s32.totalorder %s114, %s130
      %p132 = scmp.eq.s32.totalorder %s22, 0
      %p133 = por %p131, %p132
      %p134 = scmp.le.s32.totalorder 1, %s16
      %p135 = scmp.lt.s32.totalorder %s16, 3
      %p136 = pnand %p134, %p135
      %p137 = pneg %p136
      // Predicated region
      $region9: #{tpu_custom_call.1} parent=5 // pred_check
        _
      $region10: #{tpu_custom_call.1} parent=5 // pred_check_branch
        %139 = sbr.rel (%p136) target = $region12
      $region11: #{tpu_custom_call.1} parent=5 // pred_region
        %s140 = ssub.s32 %s16, 1
        // Predicated region
        $region13: #{tpu_custom_call.1} parent=11 // pred_check
          %p141 = pneg %p49
        $region14: #{tpu_custom_call.1} parent=11 // pred_check_branch
          %143 = sbr.rel (%p141) target = $region16
        $region15: #{tpu_custom_call.1} parent=11 // pred_region
          %145 = vsyncadd [#allocation3], 0
          %s146 = sshll.u32 %s0, 4
          %s147 = int_to_ptr.hbm [resolvable:$true] %s146
          %s148 = sshll.u32 [#allocation2], 4
          %s149 = int_to_ptr.vmem [resolvable:$true] %s148
          %154 = dma.hbm_to_vmem [thread:$0]  %s147, 576, %s149, [#allocation3], 64, 64, 4
        $region16: #{tpu_custom_call.1} parent=11 // pred_fallthru
          _
        // Predicated region
        $region17: #{tpu_custom_call.1} parent=11 // pred_check
          %p155 = pneg %p70
        $region18: #{tpu_custom_call.1} parent=11 // pred_check_branch
          %157 = sbr.rel (%p155) target = $region20
        $region19: #{tpu_custom_call.1} parent=11 // pred_region
          _
        $region20: #{tpu_custom_call.1} parent=11 // pred_fallthru
          _
      $region12: #{tpu_custom_call.1} parent=5 // pred_fallthru
        _
      %p158 = scmp.lt.s32.totalorder %s16, 2
      // Predicated region
      $region21: #{tpu_custom_call.1} parent=5 // pred_check
        %p159 = pneg %p158
      $region22: #{tpu_custom_call.1} parent=5 // pred_check_branch
        %161 = sbr.rel (%p159) target = $region24
      $region23: #{tpu_custom_call.1} parent=5 // pred_region
        // Predicated region
        $region25: #{tpu_custom_call.1} parent=23 // pred_check
          %p162 = pneg %p92
        $region26: #{tpu_custom_call.1} parent=23 // pred_check_branch
          %164 = sbr.rel (%p162) target = $region28
        $region27: #{tpu_custom_call.1} parent=23 // pred_region
          %s165 = sand.u32 %s82, 1
          %s166 = scalar_lea.sflag [#allocation6], %s165
          %s167 = sand.u32 %s82, 1
          %s168 = smul.addr %s167, 32
          %s169 = scalar_lea.vmem [#allocation5], %s168
          %171 = vsyncadd %s166, 0
          %s172 = smul.addr %s24, 8
          %s173 = smul.addr %s23, 8
          %s174 = sadd.s32 %s172, %s173
          %s175 = smul.addr %s174, 4
          %s176 = scalar_lea.hbm %s2, %s175
          %s177 = sshll.u32 %s176, 4
          %s178 = int_to_ptr.hbm [resolvable:$true] %s177
          %s179 = sshll.u32 %s169, 4
          %s180 = int_to_ptr.vmem [resolvable:$true] %s179
          %185 = dma.hbm_to_vmem [thread:$0]  %s178, 512, %s180, %s166, 256, 256, 16
        $region28: #{tpu_custom_call.1} parent=23 // pred_fallthru
          _
      $region24: #{tpu_custom_call.1} parent=5 // pred_fallthru
        _
      %p186 = scmp.le.s32.totalorder 1, %s16
      %p187 = scmp.lt.s32.totalorder %s16, 3
      %p188 = pnand %p186, %p187
      %p189 = pneg %p188
      // Predicated region
      $region29: #{tpu_custom_call.1} parent=5 // pred_check
        _
      $region30: #{tpu_custom_call.1} parent=5 // pred_check_branch
        %191 = sbr.rel (%p188) target = $region32
      $region31: #{tpu_custom_call.1} parent=5 // pred_region
        %s192 = ssub.s32 %s16, 1
        // Predicated region
        $region33: #{tpu_custom_call.1} parent=31 // pred_check
          %p193 = pneg %p49
        $region34: #{tpu_custom_call.1} parent=31 // pred_check_branch
          %195 = sbr.rel (%p193) target = $region36
        $region35: #{tpu_custom_call.1} parent=31 // pred_region
          %197 = dma.done [#allocation3], 576
        $region36: #{tpu_custom_call.1} parent=31 // pred_fallthru
          _
        %s198 = sand.u32 %s85, 1
        %s199 = scalar_lea.sflag [#allocation6], %s198
        %s200 = sand.u32 %s85, 1
        %s201 = smul.addr %s200, 32
        %s202 = scalar_lea.vmem [#allocation5], %s201
        // Predicated region
        $region37: #{tpu_custom_call.1} parent=31 // pred_check
          %p203 = pneg %p98
        $region38: #{tpu_custom_call.1} parent=31 // pred_check_branch
          %205 = sbr.rel (%p203) target = $region40
        $region39: #{tpu_custom_call.1} parent=31 // pred_region
          %207 = dma.done %s199, 512
        $region40: #{tpu_custom_call.1} parent=31 // pred_fallthru
          _
        %p208 = pneg %p49
        %p209 = pneg %p46
        %p210 = pneg %p70
        %p211 = pneg %p67
        %s212 = sand.u32 %s85, 1
        %s213 = scalar_lea.sflag [#allocation6], %s212
        %s214 = sand.u32 %s85, 1
        %s215 = smul.addr %s214, 32
        %s216 = scalar_lea.vmem [#allocation5], %s215
        %p217 = pneg %p98
        %p218 = pneg %p95
        %p219 = pneg %p126
        %p220 = pneg %p123
        %s221 = sand.u32 %s113, 1
        %s222 = scalar_lea.sflag [#allocation4], %s221
        %s223 = sand.u32 %s113, 1
        %s224 = smul.addr %s223, 24
        %s225 = scalar_lea.vmem [#allocation7], %s224
        %v227 = vld [vmem:[#allocation2] sm:$0xf]
        %v228 = vld [vmem:[%s202] sm:$0xff]
        %v229 = vld [vmem:[%s202 + $0x8] sm:$0xf]
        %v230 = vld [vmem:[%s202 + $0x10] sm:$0xff]
        %v231 = vld [vmem:[%s202 + $0x18] sm:$0xf]
        %s232 = scalar_lea.vmem [#allocation2], 4
        %v233 = vld [vmem:[%s232] sm:$0xf]
        %v234 = vld [vmem:[%s202] sm:$0xff]
        %v235 = vld [vmem:[%s202 + $0x8] sm:$0xff]
        %v236 = vld [vmem:[%s202 + $0x10] sm:$0xff]
        %v237 = vld [vmem:[%s202 + $0x18] sm:$0xff]
        %v242 = vunpack.c.l.b16 %v234
        %v243 = vunpack.c.h.b16 %v234
        %v244 = vunpack.c.l.b16 %v235
        %v245 = vunpack.c.h.b16 %v235
        %v246 = vunpack.c.l.b16 %v236
        %v247 = vunpack.c.h.b16 %v236
        %v248 = vunpack.c.l.b16 %v237
        %v249 = vunpack.c.h.b16 %v237
        %v250 = vpack.c.b16 %v246, %v242
        %v251 = vpack.c.b16 %v247, %v243
        %v252 = vpack.c.b16 %v248, %v244
        %v253 = vpack.c.b16 %v249, %v245
        %254 = vrot.lane.b32.xlu0 %v250, 127
        %v255 = vpop.permute.xlu0 %254
        %256 = vrot.lane.b32.xlu0 %v251, 127
        %v257 = vpop.permute.xlu0 %256
        %258 = vrot.lane.b32.xlu0 %v252, 127
        %v259 = vpop.permute.xlu0 %258
        %260 = vrot.lane.b32.xlu0 %v253, 127
        %v261 = vpop.permute.xlu0 %260
        %vm262 = vcmask 1039360
        %v263 = vsel %vm262, %v255, %v257
        %v264 = vsel %vm262, %v257, %v259
        %v265 = vsel %vm262, %v259, %v261
        %vm269 = vcmask 130048
        %v271 = vsel %vm269, %v233, 0
        %273 = vmatpush.bf16.msra.mxu0 0
        %274 = vmatpush.bf16.msra.mxu0 0
        %275 = vmatpush.bf16.msra.mxu0 0
        %276 = vmatpush.bf16.msra.mxu0 0
        %277 = vmatpush.bf16.msra.mxu0 0
        %278 = vmatpush.bf16.msra.mxu0 0
        %279 = vmatpush.bf16.msra.mxu0 0
        %280 = vmatpush.bf16.msra.mxu0 %v263
        %281 = vmatmul.bf16.gmra.mxu0 %v271
        %v282 = vpop.f32.mrf.mxu0
        %v283 = vadd.f32 0.0, %v282
        %v284 = vpop.f32.mrf.mxu0
        %285 = vdwg.mxu0
        %286 = vmatpush.bf16.msra.mxu0 0
        %287 = vmatpush.bf16.msra.mxu0 0
        %288 = vmatpush.bf16.msra.mxu0 0
        %289 = vmatpush.bf16.msra.mxu0 0
        %290 = vmatpush.bf16.msra.mxu0 0
        %291 = vmatpush.bf16.msra.mxu0 0
        %292 = vmatpush.bf16.msra.mxu0 0
        %293 = vmatpush.bf16.msra.mxu0 %v264
        %294 = vmatmul.bf16.gmra.mxu0 %v271
        %v295 = vpop.f32.mrf.mxu0
        %v296 = vadd.f32 0.0, %v295
        %v297 = vpop.f32.mrf.mxu0
        %298 = vdwg.mxu0
        %299 = vmatpush.bf16.msra.mxu0 0
        %300 = vmatpush.bf16.msra.mxu0 0
        %301 = vmatpush.bf16.msra.mxu0 0
        %302 = vmatpush.bf16.msra.mxu0 0
        %303 = vmatpush.bf16.msra.mxu0 0
        %304 = vmatpush.bf16.msra.mxu0 0
        %305 = vmatpush.bf16.msra.mxu0 0
        %306 = vmatpush.bf16.msra.mxu0 %v265
        %307 = vmatmul.bf16.gmra.mxu0 %v271
        %v308 = vpop.f32.mrf.mxu0
        %v309 = vadd.f32 0.0, %v308
        %v310 = vpop.f32.mrf.mxu0
        %311 = vdwg.mxu0
        %v316 = vunpack.c.l.b16 %v228
        %v317 = vunpack.c.h.b16 %v228
        %v318 = vunpack.c.l.b16 %v229
        %v319 = vunpack.c.l.b16 %v230
        %v320 = vunpack.c.h.b16 %v230
        %v321 = vunpack.c.l.b16 %v231
        %v322 = vpack.c.b16 %v319, %v316
        %v323 = vpack.c.b16 %v320, %v317
        %v324 = vpack.c.b16 %v321, %v318
        %v329 = vsel %vm269, %v227, 0
        %331 = vmatpush.bf16.msra.mxu0 0
        %332 = vmatpush.bf16.msra.mxu0 0
        %333 = vmatpush.bf16.msra.mxu0 0
        %334 = vmatpush.bf16.msra.mxu0 0
        %335 = vmatpush.bf16.msra.mxu0 0
        %336 = vmatpush.bf16.msra.mxu0 0
        %337 = vmatpush.bf16.msra.mxu0 0
        %338 = vmatpush.bf16.msra.mxu0 %v322
        %339 = vmatmul.bf16.gmra.mxu0 %v329
        %v340 = vpop.f32.mrf.mxu0
        %v341 = vadd.f32 %v283, %v340
        %v342 = vpop.f32.mrf.mxu0
        %343 = vdwg.mxu0
        %344 = vmatpush.bf16.msra.mxu0 0
        %345 = vmatpush.bf16.msra.mxu0 0
        %346 = vmatpush.bf16.msra.mxu0 0
        %347 = vmatpush.bf16.msra.mxu0 0
        %348 = vmatpush.bf16.msra.mxu0 0
        %349 = vmatpush.bf16.msra.mxu0 0
        %350 = vmatpush.bf16.msra.mxu0 0
        %351 = vmatpush.bf16.msra.mxu0 %v323
        %352 = vmatmul.bf16.gmra.mxu0 %v329
        %v353 = vpop.f32.mrf.mxu0
        %v354 = vadd.f32 %v296, %v353
        %v355 = vpop.f32.mrf.mxu0
        %356 = vdwg.mxu0
        %357 = vmatpush.bf16.msra.mxu0 0
        %358 = vmatpush.bf16.msra.mxu0 0
        %359 = vmatpush.bf16.msra.mxu0 0
        %360 = vmatpush.bf16.msra.mxu0 0
        %361 = vmatpush.bf16.msra.mxu0 0
        %362 = vmatpush.bf16.msra.mxu0 0
        %363 = vmatpush.bf16.msra.mxu0 0
        %364 = vmatpush.bf16.msra.mxu0 %v324
        %365 = vmatmul.bf16.gmra.mxu0 %v329
        %v366 = vpop.f32.mrf.mxu0
        %v367 = vadd.f32 %v309, %v366
        %v368 = vpop.f32.mrf.mxu0
        %369 = vdwg.mxu0
        %s370 = scalar_lea.vmem [#allocation2], 8
        %v371 = vld [vmem:[%s370] sm:$0xf]
        %372 = vrot.lane.b32.xlu0 %v250, 126
        %v373 = vpop.permute.xlu0 %372
        %374 = vrot.lane.b32.xlu0 %v251, 126
        %v375 = vpop.permute.xlu0 %374
        %376 = vrot.lane.b32.xlu0 %v252, 126
        %v377 = vpop.permute.xlu0 %376
        %378 = vrot.lane.b32.xlu0 %v253, 126
        %v379 = vpop.permute.xlu0 %378
        %vm380 = vcmask 1031168
        %v381 = vsel %vm380, %v373, %v375
        %v382 = vsel %vm380, %v375, %v377
        %v383 = vsel %vm380, %v377, %v379
        %v388 = vsel %vm269, %v371, 0
        %390 = vmatpush.bf16.msra.mxu0 0
        %391 = vmatpush.bf16.msra.mxu0 0
        %392 = vmatpush.bf16.msra.mxu0 0
        %393 = vmatpush.bf16.msra.mxu0 0
        %394 = vmatpush.bf16.msra.mxu0 0
        %395 = vmatpush.bf16.msra.mxu0 0
        %396 = vmatpush.bf16.msra.mxu0 0
        %397 = vmatpush.bf16.msra.mxu0 %v381
        %398 = vmatmul.bf16.gmra.mxu0 %v388
        %v399 = vpop.f32.mrf.mxu0
        %v400 = vadd.f32 0.0, %v399
        %v401 = vpop.f32.mrf.mxu0
        %402 = vdwg.mxu0
        %403 = vmatpush.bf16.msra.mxu0 0
        %404 = vmatpush.bf16.msra.mxu0 0
        %405 = vmatpush.bf16.msra.mxu0 0
        %406 = vmatpush.bf16.msra.mxu0 0
        %407 = vmatpush.bf16.msra.mxu0 0
        %408 = vmatpush.bf16.msra.mxu0 0
        %409 = vmatpush.bf16.msra.mxu0 0
        %410 = vmatpush.bf16.msra.mxu0 %v382
        %411 = vmatmul.bf16.gmra.mxu0 %v388
        %v412 = vpop.f32.mrf.mxu0
        %v413 = vadd.f32 0.0, %v412
        %v414 = vpop.f32.mrf.mxu0
        %415 = vdwg.mxu0
        %416 = vmatpush.bf16.msra.mxu0 0
        %417 = vmatpush.bf16.msra.mxu0 0
        %418 = vmatpush.bf16.msra.mxu0 0
        %419 = vmatpush.bf16.msra.mxu0 0
        %420 = vmatpush.bf16.msra.mxu0 0
        %421 = vmatpush.bf16.msra.mxu0 0
        %422 = vmatpush.bf16.msra.mxu0 0
        %423 = vmatpush.bf16.msra.mxu0 %v383
        %424 = vmatmul.bf16.gmra.mxu0 %v388
        %v425 = vpop.f32.mrf.mxu0
        %v426 = vadd.f32 0.0, %v425
        %v427 = vpop.f32.mrf.mxu0
        %428 = vdwg.mxu0
        %v429 = vadd.f32 %v341, %v400
        %v430 = vadd.f32 %v354, %v413
        %v431 = vadd.f32 %v367, %v426
        %s432 = scalar_lea.vmem [#allocation2], 12
        %v433 = vld [vmem:[%s432] sm:$0xf]
        %434 = vrot.lane.b32.xlu0 %v250, 110
        %v435 = vpop.permute.xlu0 %434
        %436 = vrot.lane.b32.xlu0 %v251, 110
        %v437 = vpop.permute.xlu0 %436
        %438 = vrot.lane.b32.xlu0 %v252, 110
        %v439 = vpop.permute.xlu0 %438
        %440 = vrot.lane.b32.xlu0 %v253, 110
        %v441 = vpop.permute.xlu0 %440
        %vm442 = vcmask 900096
        %v443 = vsel %vm442, %v435, %v437
        %v444 = vsel %vm442, %v437, %v439
        %v445 = vsel %vm442, %v439, %v441
        %v450 = vsel %vm269, %v433, 0
        %452 = vmatpush.bf16.msra.mxu0 0
        %453 = vmatpush.bf16.msra.mxu0 0
        %454 = vmatpush.bf16.msra.mxu0 0
        %455 = vmatpush.bf16.msra.mxu0 0
        %456 = vmatpush.bf16.msra.mxu0 0
        %457 = vmatpush.bf16.msra.mxu0 0
        %458 = vmatpush.bf16.msra.mxu0 0
        %459 = vmatpush.bf16.msra.mxu0 %v443
        %460 = vmatmul.bf16.gmra.mxu0 %v450
        %v461 = vpop.f32.mrf.mxu0
        %v462 = vadd.f32 0.0, %v461
        %v463 = vpop.f32.mrf.mxu0
        %464 = vdwg.mxu0
        %465 = vmatpush.bf16.msra.mxu0 0
        %466 = vmatpush.bf16.msra.mxu0 0
        %467 = vmatpush.bf16.msra.mxu0 0
        %468 = vmatpush.bf16.msra.mxu0 0
        %469 = vmatpush.bf16.msra.mxu0 0
        %470 = vmatpush.bf16.msra.mxu0 0
        %471 = vmatpush.bf16.msra.mxu0 0
        %472 = vmatpush.bf16.msra.mxu0 %v444
        %473 = vmatmul.bf16.gmra.mxu0 %v450
        %v474 = vpop.f32.mrf.mxu0
        %v475 = vadd.f32 0.0, %v474
        %v476 = vpop.f32.mrf.mxu0
        %477 = vdwg.mxu0
        %478 = vmatpush.bf16.msra.mxu0 0
        %479 = vmatpush.bf16.msra.mxu0 0
        %480 = vmatpush.bf16.msra.mxu0 0
        %481 = vmatpush.bf16.msra.mxu0 0
        %482 = vmatpush.bf16.msra.mxu0 0
        %483 = vmatpush.bf16.msra.mxu0 0
        %484 = vmatpush.bf16.msra.mxu0 0
        %485 = vmatpush.bf16.msra.mxu0 %v445
        %486 = vmatmul.bf16.gmra.mxu0 %v450
        %v487 = vpop.f32.mrf.mxu0
        %v488 = vadd.f32 0.0, %v487
        %v489 = vpop.f32.mrf.mxu0
        %490 = vdwg.mxu0
        %v491 = vadd.f32 %v429, %v462
        %v492 = vadd.f32 %v430, %v475
        %v493 = vadd.f32 %v431, %v488
        %s494 = scalar_lea.vmem [#allocation2], 16
        %v495 = vld [vmem:[%s494] sm:$0xf]
        %496 = vrot.lane.b32.xlu0 %v250, 109
        %v497 = vpop.permute.xlu0 %496
        %498 = vrot.lane.b32.xlu0 %v251, 109
        %v499 = vpop.permute.xlu0 %498
        %500 = vrot.lane.b32.xlu0 %v252, 109
        %v501 = vpop.permute.xlu0 %500
        %502 = vrot.lane.b32.xlu0 %v253, 109
        %v503 = vpop.permute.xlu0 %502
        %vm504 = vcmask 891904
        %v505 = vsel %vm504, %v497, %v499
        %v506 = vsel %vm504, %v499, %v501
        %v507 = vsel %vm504, %v501, %v503
        %v512 = vsel %vm269, %v495, 0
        %514 = vmatpush.bf16.msra.mxu0 0
        %515 = vmatpush.bf16.msra.mxu0 0
        %516 = vmatpush.bf16.msra.mxu0 0
        %517 = vmatpush.bf16.msra.mxu0 0
        %518 = vmatpush.bf16.msra.mxu0 0
        %519 = vmatpush.bf16.msra.mxu0 0
        %520 = vmatpush.bf16.msra.mxu0 0
        %521 = vmatpush.bf16.msra.mxu0 %v505
        %522 = vmatmul.bf16.gmra.mxu0 %v512
        %v523 = vpop.f32.mrf.mxu0
        %v524 = vadd.f32 0.0, %v523
        %v525 = vpop.f32.mrf.mxu0
        %526 = vdwg.mxu0
        %527 = vmatpush.bf16.msra.mxu0 0
        %528 = vmatpush.bf16.msra.mxu0 0
        %529 = vmatpush.bf16.msra.mxu0 0
        %530 = vmatpush.bf16.msra.mxu0 0
        %531 = vmatpush.bf16.msra.mxu0 0
        %532 = vmatpush.bf16.msra.mxu0 0
        %533 = vmatpush.bf16.msra.mxu0 0
        %534 = vmatpush.bf16.msra.mxu0 %v506
        %535 = vmatmul.bf16.gmra.mxu0 %v512
        %v536 = vpop.f32.mrf.mxu0
        %v537 = vadd.f32 0.0, %v536
        %v538 = vpop.f32.mrf.mxu0
        %539 = vdwg.mxu0
        %540 = vmatpush.bf16.msra.mxu0 0
        %541 = vmatpush.bf16.msra.mxu0 0
        %542 = vmatpush.bf16.msra.mxu0 0
        %543 = vmatpush.bf16.msra.mxu0 0
        %544 = vmatpush.bf16.msra.mxu0 0
        %545 = vmatpush.bf16.msra.mxu0 0
        %546 = vmatpush.bf16.msra.mxu0 0
        %547 = vmatpush.bf16.msra.mxu0 %v507
        %548 = vmatmul.bf16.gmra.mxu0 %v512
        %v549 = vpop.f32.mrf.mxu0
        %v550 = vadd.f32 0.0, %v549
        %v551 = vpop.f32.mrf.mxu0
        %552 = vdwg.mxu0
        %v553 = vadd.f32 %v491, %v524
        %v554 = vadd.f32 %v492, %v537
        %v555 = vadd.f32 %v493, %v550
        %s556 = scalar_lea.vmem [#allocation2], 20
        %v557 = vld [vmem:[%s556] sm:$0xf]
        %558 = vrot.lane.b32.xlu0 %v250, 108
        %v559 = vpop.permute.xlu0 %558
        %560 = vrot.lane.b32.xlu0 %v251, 108
        %v561 = vpop.permute.xlu0 %560
        %562 = vrot.lane.b32.xlu0 %v252, 108
        %v563 = vpop.permute.xlu0 %562
        %564 = vrot.lane.b32.xlu0 %v253, 108
        %v565 = vpop.permute.xlu0 %564
        %vm566 = vcmask 883712
        %v567 = vsel %vm566, %v559, %v561
        %v568 = vsel %vm566, %v561, %v563
        %v569 = vsel %vm566, %v563, %v565
        %v574 = vsel %vm269, %v557, 0
        %576 = vmatpush.bf16.msra.mxu0 0
        %577 = vmatpush.bf16.msra.mxu0 0
        %578 = vmatpush.bf16.msra.mxu0 0
        %579 = vmatpush.bf16.msra.mxu0 0
        %580 = vmatpush.bf16.msra.mxu0 0
        %581 = vmatpush.bf16.msra.mxu0 0
        %582 = vmatpush.bf16.msra.mxu0 0
        %583 = vmatpush.bf16.msra.mxu0 %v567
        %584 = vmatmul.bf16.gmra.mxu0 %v574
        %v585 = vpop.f32.mrf.mxu0
        %v586 = vadd.f32 0.0, %v585
        %v587 = vpop.f32.mrf.mxu0
        %588 = vdwg.mxu0
        %589 = vmatpush.bf16.msra.mxu0 0
        %590 = vmatpush.bf16.msra.mxu0 0
        %591 = vmatpush.bf16.msra.mxu0 0
        %592 = vmatpush.bf16.msra.mxu0 0
        %593 = vmatpush.bf16.msra.mxu0 0
        %594 = vmatpush.bf16.msra.mxu0 0
        %595 = vmatpush.bf16.msra.mxu0 0
        %596 = vmatpush.bf16.msra.mxu0 %v568
        %597 = vmatmul.bf16.gmra.mxu0 %v574
        %v598 = vpop.f32.mrf.mxu0
        %v599 = vadd.f32 0.0, %v598
        %v600 = vpop.f32.mrf.mxu0
        %601 = vdwg.mxu0
        %602 = vmatpush.bf16.msra.mxu0 0
        %603 = vmatpush.bf16.msra.mxu0 0
        %604 = vmatpush.bf16.msra.mxu0 0
        %605 = vmatpush.bf16.msra.mxu0 0
        %606 = vmatpush.bf16.msra.mxu0 0
        %607 = vmatpush.bf16.msra.mxu0 0
        %608 = vmatpush.bf16.msra.mxu0 0
        %609 = vmatpush.bf16.msra.mxu0 %v569
        %610 = vmatmul.bf16.gmra.mxu0 %v574
        %v611 = vpop.f32.mrf.mxu0
        %v612 = vadd.f32 0.0, %v611
        %v613 = vpop.f32.mrf.mxu0
        %614 = vdwg.mxu0
        %v615 = vadd.f32 %v553, %v586
        %v616 = vadd.f32 %v554, %v599
        %v617 = vadd.f32 %v555, %v612
        %s618 = scalar_lea.vmem [#allocation2], 24
        %v619 = vld [vmem:[%s618] sm:$0xf]
        %620 = vrot.lane.b32.xlu0 %v250, 92
        %v621 = vpop.permute.xlu0 %620
        %622 = vrot.lane.b32.xlu0 %v251, 92
        %v623 = vpop.permute.xlu0 %622
        %624 = vrot.lane.b32.xlu0 %v252, 92
        %v625 = vpop.permute.xlu0 %624
        %626 = vrot.lane.b32.xlu0 %v253, 92
        %v627 = vpop.permute.xlu0 %626
        %vm628 = vcmask 752640
        %v629 = vsel %vm628, %v621, %v623
        %v630 = vsel %vm628, %v623, %v625
        %v631 = vsel %vm628, %v625, %v627
        %v636 = vsel %vm269, %v619, 0
        %638 = vmatpush.bf16.msra.mxu0 0
        %639 = vmatpush.bf16.msra.mxu0 0
        %640 = vmatpush.bf16.msra.mxu0 0
        %641 = vmatpush.bf16.msra.mxu0 0
        %642 = vmatpush.bf16.msra.mxu0 0
        %643 = vmatpush.bf16.msra.mxu0 0
        %644 = vmatpush.bf16.msra.mxu0 0
        %645 = vmatpush.bf16.msra.mxu0 %v629
        %646 = vmatmul.bf16.gmra.mxu0 %v636
        %v647 = vpop.f32.mrf.mxu0
        %v648 = vadd.f32 0.0, %v647
        %v649 = vpop.f32.mrf.mxu0
        %650 = vdwg.mxu0
        %651 = vmatpush.bf16.msra.mxu0 0
        %652 = vmatpush.bf16.msra.mxu0 0
        %653 = vmatpush.bf16.msra.mxu0 0
        %654 = vmatpush.bf16.msra.mxu0 0
        %655 = vmatpush.bf16.msra.mxu0 0
        %656 = vmatpush.bf16.msra.mxu0 0
        %657 = vmatpush.bf16.msra.mxu0 0
        %658 = vmatpush.bf16.msra.mxu0 %v630
        %659 = vmatmul.bf16.gmra.mxu0 %v636
        %v660 = vpop.f32.mrf.mxu0
        %v661 = vadd.f32 0.0, %v660
        %v662 = vpop.f32.mrf.mxu0
        %663 = vdwg.mxu0
        %664 = vmatpush.bf16.msra.mxu0 0
        %665 = vmatpush.bf16.msra.mxu0 0
        %666 = vmatpush.bf16.msra.mxu0 0
        %667 = vmatpush.bf16.msra.mxu0 0
        %668 = vmatpush.bf16.msra.mxu0 0
        %669 = vmatpush.bf16.msra.mxu0 0
        %670 = vmatpush.bf16.msra.mxu0 0
        %671 = vmatpush.bf16.msra.mxu0 %v631
        %672 = vmatmul.bf16.gmra.mxu0 %v636
        %v673 = vpop.f32.mrf.mxu0
        %v674 = vadd.f32 0.0, %v673
        %v675 = vpop.f32.mrf.mxu0
        %676 = vdwg.mxu0
        %v677 = vadd.f32 %v615, %v648
        %v678 = vadd.f32 %v616, %v661
        %v679 = vadd.f32 %v617, %v674
        %s680 = scalar_lea.vmem [#allocation2], 28
        %v681 = vld [vmem:[%s680] sm:$0xf]
        %682 = vrot.lane.b32.xlu0 %v250, 91
        %v683 = vpop.permute.xlu0 %682
        %684 = vrot.lane.b32.xlu0 %v251, 91
        %v685 = vpop.permute.xlu0 %684
        %686 = vrot.lane.b32.xlu0 %v252, 91
        %v687 = vpop.permute.xlu0 %686
        %688 = vrot.lane.b32.xlu0 %v253, 91
        %v689 = vpop.permute.xlu0 %688
        %vm690 = vcmask 744448
        %v691 = vsel %vm690, %v683, %v685
        %v692 = vsel %vm690, %v685, %v687
        %v693 = vsel %vm690, %v687, %v689
        %v698 = vsel %vm269, %v681, 0
        %700 = vmatpush.bf16.msra.mxu0 0
        %701 = vmatpush.bf16.msra.mxu0 0
        %702 = vmatpush.bf16.msra.mxu0 0
        %703 = vmatpush.bf16.msra.mxu0 0
        %704 = vmatpush.bf16.msra.mxu0 0
        %705 = vmatpush.bf16.msra.mxu0 0
        %706 = vmatpush.bf16.msra.mxu0 0
        %707 = vmatpush.bf16.msra.mxu0 %v691
        %708 = vmatmul.bf16.gmra.mxu0 %v698
        %v709 = vpop.f32.mrf.mxu0
        %v710 = vadd.f32 0.0, %v709
        %v711 = vpop.f32.mrf.mxu0
        %712 = vdwg.mxu0
        %713 = vmatpush.bf16.msra.mxu0 0
        %714 = vmatpush.bf16.msra.mxu0 0
        %715 = vmatpush.bf16.msra.mxu0 0
        %716 = vmatpush.bf16.msra.mxu0 0
        %717 = vmatpush.bf16.msra.mxu0 0
        %718 = vmatpush.bf16.msra.mxu0 0
        %719 = vmatpush.bf16.msra.mxu0 0
        %720 = vmatpush.bf16.msra.mxu0 %v692
        %721 = vmatmul.bf16.gmra.mxu0 %v698
        %v722 = vpop.f32.mrf.mxu0
        %v723 = vadd.f32 0.0, %v722
        %v724 = vpop.f32.mrf.mxu0
        %725 = vdwg.mxu0
        %726 = vmatpush.bf16.msra.mxu0 0
        %727 = vmatpush.bf16.msra.mxu0 0
        %728 = vmatpush.bf16.msra.mxu0 0
        %729 = vmatpush.bf16.msra.mxu0 0
        %730 = vmatpush.bf16.msra.mxu0 0
        %731 = vmatpush.bf16.msra.mxu0 0
        %732 = vmatpush.bf16.msra.mxu0 0
        %733 = vmatpush.bf16.msra.mxu0 %v693
        %734 = vmatmul.bf16.gmra.mxu0 %v698
        %v735 = vpop.f32.mrf.mxu0
        %v736 = vadd.f32 0.0, %v735
        %v737 = vpop.f32.mrf.mxu0
        %738 = vdwg.mxu0
        %v739 = vadd.f32 %v677, %v710
        %v740 = vadd.f32 %v678, %v723
        %v741 = vadd.f32 %v679, %v736
        %s742 = scalar_lea.vmem [#allocation2], 32
        %v743 = vld [vmem:[%s742] sm:$0xf]
        %744 = vrot.lane.b32.xlu0 %v250, 90
        %v745 = vpop.permute.xlu0 %744
        %746 = vrot.lane.b32.xlu0 %v251, 90
        %v747 = vpop.permute.xlu0 %746
        %748 = vrot.lane.b32.xlu0 %v252, 90
        %v749 = vpop.permute.xlu0 %748
        %750 = vrot.lane.b32.xlu0 %v253, 90
        %v751 = vpop.permute.xlu0 %750
        %vm752 = vcmask 736256
        %v753 = vsel %vm752, %v745, %v747
        %v754 = vsel %vm752, %v747, %v749
        %v755 = vsel %vm752, %v749, %v751
        %v760 = vsel %vm269, %v743, 0
        %762 = vmatpush.bf16.msra.mxu0 0
        %763 = vmatpush.bf16.msra.mxu0 0
        %764 = vmatpush.bf16.msra.mxu0 0
        %765 = vmatpush.bf16.msra.mxu0 0
        %766 = vmatpush.bf16.msra.mxu0 0
        %767 = vmatpush.bf16.msra.mxu0 0
        %768 = vmatpush.bf16.msra.mxu0 0
        %769 = vmatpush.bf16.msra.mxu0 %v753
        %770 = vmatmul.bf16.gmra.mxu0 %v760
        %v771 = vpop.f32.mrf.mxu0
        %v772 = vadd.f32 0.0, %v771
        %v773 = vpop.f32.mrf.mxu0
        %774 = vdwg.mxu0
        %775 = vmatpush.bf16.msra.mxu0 0
        %776 = vmatpush.bf16.msra.mxu0 0
        %777 = vmatpush.bf16.msra.mxu0 0
        %778 = vmatpush.bf16.msra.mxu0 0
        %779 = vmatpush.bf16.msra.mxu0 0
        %780 = vmatpush.bf16.msra.mxu0 0
        %781 = vmatpush.bf16.msra.mxu0 0
        %782 = vmatpush.bf16.msra.mxu0 %v754
        %783 = vmatmul.bf16.gmra.mxu0 %v760
        %v784 = vpop.f32.mrf.mxu0
        %v785 = vadd.f32 0.0, %v784
        %v786 = vpop.f32.mrf.mxu0
        %787 = vdwg.mxu0
        %788 = vmatpush.bf16.msra.mxu0 0
        %789 = vmatpush.bf16.msra.mxu0 0
        %790 = vmatpush.bf16.msra.mxu0 0
        %791 = vmatpush.bf16.msra.mxu0 0
        %792 = vmatpush.bf16.msra.mxu0 0
        %793 = vmatpush.bf16.msra.mxu0 0
        %794 = vmatpush.bf16.msra.mxu0 0
        %795 = vmatpush.bf16.msra.mxu0 %v755
        %796 = vmatmul.bf16.gmra.mxu0 %v760
        %v797 = vpop.f32.mrf.mxu0
        %v798 = vadd.f32 0.0, %v797
        %v799 = vpop.f32.mrf.mxu0
        %800 = vdwg.mxu0
        %v801 = vadd.f32 %v739, %v772
        %v802 = vadd.f32 %v740, %v785
        %v803 = vadd.f32 %v741, %v798
        %v804 = vld [vmem:[%s1] sm:$0xff]
        %806 = vset.pattern.permute.xlu0 0
        %807 = vperm.xlu0 %806, %v804
        %v808 = vpop.permute.xlu0 %807
        %v810 = vadd.f32 %v801, %v808
        %v811 = vadd.f32 %v802, %v808
        %v812 = vadd.f32 %v803, %v808
        %v813 = vmax.f32 %v810, 0.0
        %v814 = vmax.f32 %v811, 0.0
        %v815 = vmax.f32 %v812, 0.0
        %816 = vst [vmem:[%s225] sm:$0xff] %v813
        %817 = vst [vmem:[%s225 + $0x8] sm:$0xff] %v814
        %818 = vst [vmem:[%s225 + $0x10] sm:$0xff] %v815
        %s819 = sand.u32 %s113, 1
        %s820 = scalar_lea.sflag [#allocation4], %s819
        %s821 = sand.u32 %s113, 1
        %s822 = smul.addr %s821, 24
        %s823 = scalar_lea.vmem [#allocation7], %s822
        // Predicated region
        $region41: #{tpu_custom_call.1} parent=31 // pred_check
          %p824 = pneg %p123
        $region42: #{tpu_custom_call.1} parent=31 // pred_check_branch
          %826 = sbr.rel (%p824) target = $region44
        $region43: #{tpu_custom_call.1} parent=31 // pred_region
          %828 = vsyncadd %s820, 0
          %s829 = smul.addr %s26, 3
          %s830 = smul.addr %s25, 3
          %s831 = sadd.s32 %s829, %s830
          %s832 = smul.addr %s831, 8
          %s833 = scalar_lea.hbm %s3, %s832
          %s835 = sshll.u32 %s823, 4
          %s836 = int_to_ptr.vmem [resolvable:$true] %s835
          %s837 = sshll.u32 %s833, 4
          %s838 = int_to_ptr.hbm [resolvable:$true] %s837
          %840 = dma.vmem_to_hbm [thread:$0]  %s836, 384, %s838, %s820
        $region44: #{tpu_custom_call.1} parent=31 // pred_fallthru
          _
      $region32: #{tpu_custom_call.1} parent=5 // pred_fallthru
        _
      %p841 = scmp.le.s32.totalorder 2, %s16
      // Predicated region
      $region45: #{tpu_custom_call.1} parent=5 // pred_check
        %p842 = pneg %p841
      $region46: #{tpu_custom_call.1} parent=5 // pred_check_branch
        %844 = sbr.rel (%p842) target = $region48
      $region47: #{tpu_custom_call.1} parent=5 // pred_region
        %s845 = ssub.s32 %s16, 2
        // Predicated region
        $region49: #{tpu_custom_call.1} parent=47 // pred_check
          %p846 = pneg %p129
        $region50: #{tpu_custom_call.1} parent=47 // pred_check_branch
          %848 = sbr.rel (%p846) target = $region52
        $region51: #{tpu_custom_call.1} parent=47 // pred_region
          %s849 = sand.u32 %s114, 1
          %s850 = scalar_lea.sflag [#allocation4], %s849
          %s851 = sand.u32 %s114, 1
          %s852 = smul.addr %s851, 24
          %s853 = scalar_lea.vmem [#allocation7], %s852
          %855 = dma.done %s850, 384
        $region52: #{tpu_custom_call.1} parent=47 // pred_fallthru
          _
      $region48: #{tpu_custom_call.1} parent=5 // pred_fallthru
        _
    $region6: #{tpu_custom_call.1} parent=1 // loop_footer
      %s20 = sadd.s32 1, %s16
    $region7: #{tpu_custom_call.1} parent=1 // loop_footer_branch
      %15 = sbr.rel target = $region3
    $region8: #{tpu_custom_call.1} parent=1 // loop_exit
      _
    %856 = vsyncpa [#allocation3], 1
    %s857 = scalar_lea.sflag [#allocation3], 1
    %858 = vsyncpa %s857, 1
    %859 = vsyncpa [#allocation6], 1
    %s860 = scalar_lea.sflag [#allocation6], 1
    %861 = vsyncpa %s860, 1
    %862 = vsyncpa [#allocation4], 1
    %s863 = scalar_lea.sflag [#allocation4], 1
    %864 = vsyncpa %s863, 1

</llo_original>
